<compile_context>
chip_gen: v7x
topology: tpu7x:2x2x1
jax: 0.10.0
libtpu: 0.0.40
codegen_flags: <defaults>
</compile_context>

<pallas_src>
import jax
import jax.numpy as jnp
from jax.experimental import pallas as pl
from jax.experimental.pallas import tpu as pltpu

LANE = 128


def _round_up(n, m):
    return ((n + m - 1) // m) * m


def baseline_classifier(x_nchw, w_conv_33cf, b_conv, w_cls, b_cls, *, tile_h=8):
    """x_nchw: [B, C, H, W] f32.  w_conv_33cf: [3, 3, C, F], b_conv: [F].
       w_cls: [nclasses, F] (PyTorch Linear layout), b_cls: [nclasses]."""
    B, C, H, W = x_nchw.shape
    F_ = w_conv_33cf.shape[-1]
    ncls = w_cls.shape[0]

    F_pad = _round_up(F_, LANE)          # lane-dense feature dim
    N_pad = _round_up(ncls, LANE)        # lane-dense output slab

    if H % tile_h != 0:
        tile_h = H
    n_tiles = H // tile_h
    Wp = W + 2
    M = tile_h * Wp                      # rows fed to the MXU per tile (2 masked cols/row)
    L = (tile_h + 2) * Wp + 2            # flattened padded tile + 1 guard elem each end

    # ---- glue (layout only, NOT im2col): NCHW -> padded NHWC row tiles, flattened ----
    x = jnp.transpose(x_nchw, (0, 2, 3, 1)).astype(jnp.bfloat16)           # [B,H,W,C]
    xp = jnp.pad(x, ((0, 0), (1, 1), (1, 1), (0, 0)))                      # [B,H+2,Wp,C]
    tiles = [xp[:, t * tile_h: t * tile_h + tile_h + 2] for t in range(n_tiles)]
    x_tiles = jnp.stack(tiles, axis=1)                                     # [B,T,th+2,Wp,C]
    x_flat = x_tiles.reshape(B, n_tiles, (tile_h + 2) * Wp, C)
    x_flat = jnp.pad(x_flat, ((0, 0), (0, 0), (1, 1), (0, 0)))             # [B,T,L,C]

    # conv weights: [3,3,C,F] -> [9, C, F_pad] bf16 (tap-major), bias [1, F_pad] f32
    w9 = jnp.pad(w_conv_33cf.reshape(9, C, F_),
                 ((0, 0), (0, 0), (0, F_pad - F_))).astype(jnp.bfloat16)
    bconv = jnp.pad(b_conv, (0, F_pad - F_)).reshape(1, F_pad).astype(jnp.float32)

    # classifier: [ncls, F] -> [F_pad, N_pad] bf16, bias [1, N_pad] f32
    wcls = jnp.pad(jnp.transpose(w_cls),
                   ((0, F_pad - F_), (0, N_pad - ncls))).astype(jnp.bfloat16)
    bcls = jnp.pad(b_cls, (0, N_pad - ncls)).reshape(1, N_pad).astype(jnp.float32)

    # mask of valid output columns inside each M-row tile (cols 1..W of each Wp-row)
    col = jnp.arange(M) % Wp
    mask = ((col >= 1) & (col <= W)).astype(jnp.float32).reshape(M, 1)

    inv_hw = 1.0 / float(H * W)

    def kernel(x_ref, wconv_ref, bconv_ref, mask_ref, wcls_ref, bcls_ref,
               out_ref, acc_ref):
        t = pl.program_id(1)

        @pl.when(t == 0)
        def _init():
            acc_ref[...] = jnp.zeros_like(acc_ref)

        xv = x_ref[...]                                    # [L, C] bf16
        feat = jnp.zeros((M, F_pad), jnp.float32)
        for dh in range(3):                                # 3x3 conv as 9 MXU matmuls
            for dw in range(3):
                start = dh * Wp + dw                       # static tap offset
                tap = xv[start:start + M, :]               # [M, C] bf16
                feat = feat + jnp.dot(tap, wconv_ref[dh * 3 + dw],
                                      preferred_element_type=jnp.float32)
        # bias + ReLU in f32; zero out the 2 invalid (halo) columns per row
        feat = jnp.maximum(feat + bconv_ref[...], 0.0) * mask_ref[...]
        # global-average-pool partial sum (f32 accumulator in VMEM scratch)
        acc_ref[...] = acc_ref[...] + jnp.sum(feat, axis=0, keepdims=True)

        @pl.when(t == n_tiles - 1)
        def _finalize():
            pooled = acc_ref[...] * inv_hw                 # [1, F_pad] f32 mean
            logits = jnp.dot(pooled.astype(jnp.bfloat16), wcls_ref[...],
                             preferred_element_type=jnp.float32) + bcls_ref[...]
            out_ref[...] = logits.astype(out_ref.dtype)

    out = pl.pallas_call(
        kernel,
        out_shape=jax.ShapeDtypeStruct((B, 1, N_pad), jnp.float32),
        grid_spec=pltpu.PrefetchScalarGridSpec(
            num_scalar_prefetch=0,
            grid=(B, n_tiles),
            in_specs=[
                pl.BlockSpec((None, None, L, C), lambda b, t: (b, t, 0, 0)),
                pl.BlockSpec((9, C, F_pad), lambda b, t: (0, 0, 0)),
                pl.BlockSpec((1, F_pad), lambda b, t: (0, 0)),
                pl.BlockSpec((M, 1), lambda b, t: (0, 0)),
                pl.BlockSpec((F_pad, N_pad), lambda b, t: (0, 0)),
                pl.BlockSpec((1, N_pad), lambda b, t: (0, 0)),
            ],
            out_specs=pl.BlockSpec((None, 1, N_pad), lambda b, t: (b, 0, 0)),
            scratch_shapes=[pltpu.VMEM((1, F_pad), jnp.float32)],
        ),
        compiler_params=pltpu.CompilerParams(
            dimension_semantics=("parallel", "arbitrary"),
            vmem_limit_bytes=32 * 1024 * 1024,   # safe on v5e/v6e (128 MiB) and v7x (64 MiB)
        ),
    )(x_flat, w9, bconv, mask, wcls, bcls)

    return out[:, 0, :ncls]


if __name__ == "__main__":
    B, C, H, W = 2, 4, 16, 16
    F_ = 32          # extractor.feature_dim
    NCLS = 10        # nclasses

    key = jax.random.PRNGKey(0)
    kx, kw1, kb1, kw2, kb2 = jax.random.split(key, 5)

    x = jax.random.normal(kx, (B, C, H, W), dtype=jnp.float32)
    w_conv = jax.random.normal(kw1, (3, 3, C, F_), dtype=jnp.float32) * 0.1
    b_conv = jax.random.normal(kb1, (F_,), dtype=jnp.float32) * 0.1
    w_cls = jax.random.normal(kw2, (NCLS, F_), dtype=jnp.float32) * 0.1
    b_cls = jax.random.normal(kb2, (NCLS,), dtype=jnp.float32) * 0.1

    logits = baseline_classifier(x, w_conv, b_conv, w_cls, b_cls)
    jax.block_until_ready(logits)

    # pure-JAX f32 reference (conv -> ReLU -> GAP -> linear), PyTorch semantics
    w_oihw = jnp.transpose(w_conv, (3, 2, 0, 1))                # [F, C, 3, 3]
    feat = jax.lax.conv_general_dilated(
        x, w_oihw, window_strides=(1, 1), padding="SAME",
        dimension_numbers=("NCHW", "OIHW", "NCHW"))
    feat = jnp.maximum(feat + b_conv[None, :, None, None], 0.0).mean(axis=(2, 3))
    ref = feat @ w_cls.T + b_cls

    assert logits.shape == (B, NCLS)
    max_err = jnp.max(jnp.abs(logits - ref))
    # matmul operands are bf16 (MXU-native); accumulation stays f32 -> slightly loose tol
    assert jnp.allclose(logits, ref, atol=3e-2, rtol=3e-2), f"mismatch vs ref, max_err={max_err}"
    print("KERNEL_OK")
</pallas_src>

<mosaic_0001>
module attributes {stable_mosaic.version = 11 : i64} {
  func.func @kernel(%arg0: i32, %arg1: i32, %arg2: memref<1x1x182x4xbf16, #tpu.memory_space<vmem>>, %arg3: memref<9x4x128xbf16, #tpu.memory_space<vmem>>, %arg4: memref<1x128xf32, #tpu.memory_space<vmem>>, %arg5: memref<144x1xf32, #tpu.memory_space<vmem>>, %arg6: memref<128x128xbf16, #tpu.memory_space<vmem>>, %arg7: memref<1x128xf32, #tpu.memory_space<vmem>>, %arg8: memref<1x1x128xf32, #tpu.memory_space<vmem>>, %arg9: memref<1x128xf32, #tpu.memory_space<vmem>>) attributes {dimension_semantics = [#tpu.dimension_semantics<parallel>, #tpu.dimension_semantics<arbitrary>], iteration_bounds = array<i64: 2, 2>, scalar_prefetch = 0 : i64, scratch_operands = 1 : i64, tpu.core_type = #tpu.core_type<tc>, window_params = [{transform_indices = @transform_0, window_bounds = array<i64: 1, 1, 182, 4>}, {pipeline_mode = #tpu.pipeline_mode<synchronous>, transform_indices = @transform_1, window_bounds = array<i64: 9, 4, 128>}, {pipeline_mode = #tpu.pipeline_mode<synchronous>, transform_indices = @transform_2, window_bounds = array<i64: 1, 128>}, {pipeline_mode = #tpu.pipeline_mode<synchronous>, transform_indices = @transform_3, window_bounds = array<i64: 144, 1>}, {pipeline_mode = #tpu.pipeline_mode<synchronous>, transform_indices = @transform_4, window_bounds = array<i64: 128, 128>}, {pipeline_mode = #tpu.pipeline_mode<synchronous>, transform_indices = @transform_5, window_bounds = array<i64: 1, 128>}, {transform_indices = @transform_6, window_bounds = array<i64: 1, 1, 128>}]} {
    %c0_i32 = arith.constant 0 : i32
    %0 = arith.cmpi eq, %arg1, %c0_i32 : i32
    %1 = arith.extui %0 : i1 to i32
    %c0_i32_0 = arith.constant 0 : i32
    %2 = arith.cmpi ne, %1, %c0_i32_0 : i32
    scf.if %2 {
      %cst_43 = arith.constant 0.000000e+00 : f32
      %67 = vector.broadcast %cst_43 : f32 to vector<1x128xf32>
      %c0_44 = arith.constant 0 : index
      %c0_45 = arith.constant 0 : index
      %68 = vector.load %arg9[%c0_44, %c0_45] : memref<1x128xf32, #tpu.memory_space<vmem>>, vector<1x128xf32>
      tpu.vector_store %arg9[%c0_44, %c0_45], %67 {strides = array<i32>} : memref<1x128xf32, #tpu.memory_space<vmem>>, vector<1x128xf32>,
    } else {
    }
    %c0 = arith.constant 0 : index
    %c0_1 = arith.constant 0 : index
    %c0_2 = arith.constant 0 : index
    %c0_3 = arith.constant 0 : index
    %3 = vector.load %arg2[%c0, %c0_1, %c0_2, %c0_3] : memref<1x1x182x4xbf16, #tpu.memory_space<vmem>>, vector<1x1x182x4xbf16>
    %4 = vector.shape_cast %3 : vector<1x1x182x4xbf16> to vector<182x4xbf16>
    %cst = arith.constant 0.000000e+00 : f32
    %5 = vector.broadcast %cst : f32 to vector<144x128xf32>
    %6 = vector.extract_strided_slice %4 {offsets = [0, 0], sizes = [144, 4], strides = [1, 1]} : vector<182x4xbf16> to vector<144x4xbf16>
    %c0_4 = arith.constant 0 : index
    %c0_5 = arith.constant 0 : index
    %c0_6 = arith.constant 0 : index
    %7 = vector.load %arg3[%c0_4, %c0_5, %c0_6] : memref<9x4x128xbf16, #tpu.memory_space<vmem>>, vector<1x4x128xbf16>
    %8 = vector.shape_cast %7 : vector<1x4x128xbf16> to vector<4x128xbf16>
    %cst_7 = arith.constant dense<0.000000e+00> : vector<144x128xf32>
    %9 = tpu.matmul %6, %8, %cst_7 {dimension_numbers = #tpu.dot_dimension_numbers<[1], [0], [0], [1], [0, 0, 1, 1], [], []>} : vector<144x4xbf16>, vector<4x128xbf16>, vector<144x128xf32> -> vector<144x128xf32>
    %10 = arith.addf %5, %9 : vector<144x128xf32>
    %11 = vector.extract_strided_slice %4 {offsets = [1, 0], sizes = [144, 4], strides = [1, 1]} : vector<182x4xbf16> to vector<144x4xbf16>
    %c1 = arith.constant 1 : index
    %c0_8 = arith.constant 0 : index
    %c0_9 = arith.constant 0 : index
    %12 = vector.load %arg3[%c1, %c0_8, %c0_9] : memref<9x4x128xbf16, #tpu.memory_space<vmem>>, vector<1x4x128xbf16>
    %13 = vector.shape_cast %12 : vector<1x4x128xbf16> to vector<4x128xbf16>
    %cst_10 = arith.constant dense<0.000000e+00> : vector<144x128xf32>
    %14 = tpu.matmul %11, %13, %cst_10 {dimension_numbers = #tpu.dot_dimension_numbers<[1], [0], [0], [1], [0, 0, 1, 1], [], []>} : vector<144x4xbf16>, vector<4x128xbf16>, vector<144x128xf32> -> vector<144x128xf32>
    %15 = arith.addf %10, %14 : vector<144x128xf32>
    %16 = vector.extract_strided_slice %4 {offsets = [2, 0], sizes = [144, 4], strides = [1, 1]} : vector<182x4xbf16> to vector<144x4xbf16>
    %c2 = arith.constant 2 : index
    %c0_11 = arith.constant 0 : index
    %c0_12 = arith.constant 0 : index
    %17 = vector.load %arg3[%c2, %c0_11, %c0_12] : memref<9x4x128xbf16, #tpu.memory_space<vmem>>, vector<1x4x128xbf16>
    %18 = vector.shape_cast %17 : vector<1x4x128xbf16> to vector<4x128xbf16>
    %cst_13 = arith.constant dense<0.000000e+00> : vector<144x128xf32>
    %19 = tpu.matmul %16, %18, %cst_13 {dimension_numbers = #tpu.dot_dimension_numbers<[1], [0], [0], [1], [0, 0, 1, 1], [], []>} : vector<144x4xbf16>, vector<4x128xbf16>, vector<144x128xf32> -> vector<144x128xf32>
    %20 = arith.addf %15, %19 : vector<144x128xf32>
    %21 = vector.extract_strided_slice %4 {offsets = [18, 0], sizes = [144, 4], strides = [1, 1]} : vector<182x4xbf16> to vector<144x4xbf16>
    %c3 = arith.constant 3 : index
    %c0_14 = arith.constant 0 : index
    %c0_15 = arith.constant 0 : index
    %22 = vector.load %arg3[%c3, %c0_14, %c0_15] : memref<9x4x128xbf16, #tpu.memory_space<vmem>>, vector<1x4x128xbf16>
    %23 = vector.shape_cast %22 : vector<1x4x128xbf16> to vector<4x128xbf16>
    %cst_16 = arith.constant dense<0.000000e+00> : vector<144x128xf32>
    %24 = tpu.matmul %21, %23, %cst_16 {dimension_numbers = #tpu.dot_dimension_numbers<[1], [0], [0], [1], [0, 0, 1, 1], [], []>} : vector<144x4xbf16>, vector<4x128xbf16>, vector<144x128xf32> -> vector<144x128xf32>
    %25 = arith.addf %20, %24 : vector<144x128xf32>
    %26 = vector.extract_strided_slice %4 {offsets = [19, 0], sizes = [144, 4], strides = [1, 1]} : vector<182x4xbf16> to vector<144x4xbf16>
    %c4 = arith.constant 4 : index
    %c0_17 = arith.constant 0 : index
    %c0_18 = arith.constant 0 : index
    %27 = vector.load %arg3[%c4, %c0_17, %c0_18] : memref<9x4x128xbf16, #tpu.memory_space<vmem>>, vector<1x4x128xbf16>
    %28 = vector.shape_cast %27 : vector<1x4x128xbf16> to vector<4x128xbf16>
    %cst_19 = arith.constant dense<0.000000e+00> : vector<144x128xf32>
    %29 = tpu.matmul %26, %28, %cst_19 {dimension_numbers = #tpu.dot_dimension_numbers<[1], [0], [0], [1], [0, 0, 1, 1], [], []>} : vector<144x4xbf16>, vector<4x128xbf16>, vector<144x128xf32> -> vector<144x128xf32>
    %30 = arith.addf %25, %29 : vector<144x128xf32>
    %31 = vector.extract_strided_slice %4 {offsets = [20, 0], sizes = [144, 4], strides = [1, 1]} : vector<182x4xbf16> to vector<144x4xbf16>
    %c5 = arith.constant 5 : index
    %c0_20 = arith.constant 0 : index
    %c0_21 = arith.constant 0 : index
    %32 = vector.load %arg3[%c5, %c0_20, %c0_21] : memref<9x4x128xbf16, #tpu.memory_space<vmem>>, vector<1x4x128xbf16>
    %33 = vector.shape_cast %32 : vector<1x4x128xbf16> to vector<4x128xbf16>
    %cst_22 = arith.constant dense<0.000000e+00> : vector<144x128xf32>
    %34 = tpu.matmul %31, %33, %cst_22 {dimension_numbers = #tpu.dot_dimension_numbers<[1], [0], [0], [1], [0, 0, 1, 1], [], []>} : vector<144x4xbf16>, vector<4x128xbf16>, vector<144x128xf32> -> vector<144x128xf32>
    %35 = arith.addf %30, %34 : vector<144x128xf32>
    %36 = vector.extract_strided_slice %4 {offsets = [36, 0], sizes = [144, 4], strides = [1, 1]} : vector<182x4xbf16> to vector<144x4xbf16>
    %c6 = arith.constant 6 : index
    %c0_23 = arith.constant 0 : index
    %c0_24 = arith.constant 0 : index
    %37 = vector.load %arg3[%c6, %c0_23, %c0_24] : memref<9x4x128xbf16, #tpu.memory_space<vmem>>, vector<1x4x128xbf16>
    %38 = vector.shape_cast %37 : vector<1x4x128xbf16> to vector<4x128xbf16>
    %cst_25 = arith.constant dense<0.000000e+00> : vector<144x128xf32>
    %39 = tpu.matmul %36, %38, %cst_25 {dimension_numbers = #tpu.dot_dimension_numbers<[1], [0], [0], [1], [0, 0, 1, 1], [], []>} : vector<144x4xbf16>, vector<4x128xbf16>, vector<144x128xf32> -> vector<144x128xf32>
    %40 = arith.addf %35, %39 : vector<144x128xf32>
    %41 = vector.extract_strided_slice %4 {offsets = [37, 0], sizes = [144, 4], strides = [1, 1]} : vector<182x4xbf16> to vector<144x4xbf16>
    %c7 = arith.constant 7 : index
    %c0_26 = arith.constant 0 : index
    %c0_27 = arith.constant 0 : index
    %42 = vector.load %arg3[%c7, %c0_26, %c0_27] : memref<9x4x128xbf16, #tpu.memory_space<vmem>>, vector<1x4x128xbf16>
    %43 = vector.shape_cast %42 : vector<1x4x128xbf16> to vector<4x128xbf16>
    %cst_28 = arith.constant dense<0.000000e+00> : vector<144x128xf32>
    %44 = tpu.matmul %41, %43, %cst_28 {dimension_numbers = #tpu.dot_dimension_numbers<[1], [0], [0], [1], [0, 0, 1, 1], [], []>} : vector<144x4xbf16>, vector<4x128xbf16>, vector<144x128xf32> -> vector<144x128xf32>
    %45 = arith.addf %40, %44 : vector<144x128xf32>
    %46 = vector.extract_strided_slice %4 {offsets = [38, 0], sizes = [144, 4], strides = [1, 1]} : vector<182x4xbf16> to vector<144x4xbf16>
    %c8 = arith.constant 8 : index
    %c0_29 = arith.constant 0 : index
    %c0_30 = arith.constant 0 : index
    %47 = vector.load %arg3[%c8, %c0_29, %c0_30] : memref<9x4x128xbf16, #tpu.memory_space<vmem>>, vector<1x4x128xbf16>
    %48 = vector.shape_cast %47 : vector<1x4x128xbf16> to vector<4x128xbf16>
    %cst_31 = arith.constant dense<0.000000e+00> : vector<144x128xf32>
    %49 = tpu.matmul %46, %48, %cst_31 {dimension_numbers = #tpu.dot_dimension_numbers<[1], [0], [0], [1], [0, 0, 1, 1], [], []>} : vector<144x4xbf16>, vector<4x128xbf16>, vector<144x128xf32> -> vector<144x128xf32>
    %50 = arith.addf %45, %49 : vector<144x128xf32>
    %c0_32 = arith.constant 0 : index
    %c0_33 = arith.constant 0 : index
    %51 = vector.load %arg4[%c0_32, %c0_33] : memref<1x128xf32, #tpu.memory_space<vmem>>, vector<1x128xf32>
    %52 = vector.broadcast %51 : vector<1x128xf32> to vector<144x128xf32>
    %53 = arith.addf %50, %52 : vector<144x128xf32>
    %cst_34 = arith.constant 0.000000e+00 : f32
    %54 = vector.broadcast %cst_34 : f32 to vector<144x128xf32>
    %55 = arith.maximumf %53, %54 : vector<144x128xf32>
    %c0_35 = arith.constant 0 : index
    %c0_36 = arith.constant 0 : index
    %56 = vector.load %arg5[%c0_35, %c0_36] : memref<144x1xf32, #tpu.memory_space<vmem>>, vector<144x1xf32>
    %57 = vector.broadcast %56 : vector<144x1xf32> to vector<144x128xf32>
    %58 = arith.mulf %55, %57 : vector<144x128xf32>
    %c0_37 = arith.constant 0 : index
    %c0_38 = arith.constant 0 : index
    %59 = vector.load %arg9[%c0_37, %c0_38] : memref<1x128xf32, #tpu.memory_space<vmem>>, vector<1x128xf32>
    %cst_39 = arith.constant dense<0.000000e+00> : vector<128xf32>
    %60 = vector.multi_reduction <add>, %58, %cst_39 [0] : vector<144x128xf32> to vector<128xf32>
    %61 = vector.shape_cast %60 : vector<128xf32> to vector<1x128xf32>
    %62 = arith.addf %59, %61 : vector<1x128xf32>
    %c0_40 = arith.constant 0 : index
    %c0_41 = arith.constant 0 : index
    %63 = vector.load %arg9[%c0_40, %c0_41] : memref<1x128xf32, #tpu.memory_space<vmem>>, vector<1x128xf32>
    tpu.vector_store %arg9[%c0_40, %c0_41], %62 {strides = array<i32>} : memref<1x128xf32, #tpu.memory_space<vmem>>, vector<1x128xf32>,
    %c1_i32 = arith.constant 1 : i32
    %64 = arith.cmpi eq, %arg1, %c1_i32 : i32
    %65 = arith.extui %64 : i1 to i32
    %c0_i32_42 = arith.constant 0 : i32
    %66 = arith.cmpi ne, %65, %c0_i32_42 : i32
    scf.if %66 {
      %c0_43 = arith.constant 0 : index
      %c0_44 = arith.constant 0 : index
      %67 = vector.load %arg9[%c0_43, %c0_44] : memref<1x128xf32, #tpu.memory_space<vmem>>, vector<1x128xf32>
      %cst_45 = arith.constant 3.906250e-03 : f32
      %68 = vector.broadcast %cst_45 : f32 to vector<1x128xf32>
      %69 = arith.mulf %67, %68 : vector<1x128xf32>
      %70 = arith.truncf %69 : vector<1x128xf32> to vector<1x128xbf16>
      %c0_46 = arith.constant 0 : index
      %c0_47 = arith.constant 0 : index
      %71 = vector.load %arg6[%c0_46, %c0_47] : memref<128x128xbf16, #tpu.memory_space<vmem>>, vector<128x128xbf16>
      %cst_48 = arith.constant dense<0.000000e+00> : vector<1x128xf32>
      %72 = tpu.matmul %70, %71, %cst_48 {dimension_numbers = #tpu.dot_dimension_numbers<[1], [0], [0], [1], [0, 0, 1, 1], [], []>} : vector<1x128xbf16>, vector<128x128xbf16>, vector<1x128xf32> -> vector<1x128xf32>
      %c0_49 = arith.constant 0 : index
      %c0_50 = arith.constant 0 : index
      %73 = vector.load %arg7[%c0_49, %c0_50] : memref<1x128xf32, #tpu.memory_space<vmem>>, vector<1x128xf32>
      %74 = arith.addf %72, %73 : vector<1x128xf32>
      %c0_51 = arith.constant 0 : index
      %c0_52 = arith.constant 0 : index
      %c0_53 = arith.constant 0 : index
      %75 = vector.load %arg8[%c0_51, %c0_52, %c0_53] : memref<1x1x128xf32, #tpu.memory_space<vmem>>, vector<1x1x128xf32>
      %76 = vector.shape_cast %75 : vector<1x1x128xf32> to vector<1x128xf32>
      %77 = vector.shape_cast %74 : vector<1x128xf32> to vector<1x1x128xf32>
      tpu.vector_store %arg8[%c0_51, %c0_52, %c0_53], %77 {strides = array<i32>} : memref<1x1x128xf32, #tpu.memory_space<vmem>>, vector<1x1x128xf32>,
    } else {
    }
    return
  }
  func.func @transform_0(%arg0: i32, %arg1: i32) -> (i32, i32, i32, i32) {
    %c0_i32 = arith.constant 0 : i32
    %c0_i32_0 = arith.constant 0 : i32
    %c0_i32_1 = arith.constant 0 : i32
    return %arg0, %arg1, %c0_i32, %c0_i32_0 : i32, i32, i32, i32
  }
  func.func @transform_1(%arg0: i32, %arg1: i32) -> (i32, i32, i32) {
    %c0_i32 = arith.constant 0 : i32
    %c0_i32_0 = arith.constant 0 : i32
    %c0_i32_1 = arith.constant 0 : i32
    %c0_i32_2 = arith.constant 0 : i32
    return %c0_i32, %c0_i32_0, %c0_i32_1 : i32, i32, i32
  }
  func.func @transform_2(%arg0: i32, %arg1: i32) -> (i32, i32) {
    %c0_i32 = arith.constant 0 : i32
    %c0_i32_0 = arith.constant 0 : i32
    %c0_i32_1 = arith.constant 0 : i32
    return %c0_i32, %c0_i32_0 : i32, i32
  }
  func.func @transform_3(%arg0: i32, %arg1: i32) -> (i32, i32) {
    %c0_i32 = arith.constant 0 : i32
    %c0_i32_0 = arith.constant 0 : i32
    %c0_i32_1 = arith.constant 0 : i32
    return %c0_i32, %c0_i32_0 : i32, i32
  }
  func.func @transform_4(%arg0: i32, %arg1: i32) -> (i32, i32) {
    %c0_i32 = arith.constant 0 : i32
    %c0_i32_0 = arith.constant 0 : i32
    %c0_i32_1 = arith.constant 0 : i32
    return %c0_i32, %c0_i32_0 : i32, i32
  }
  func.func @transform_5(%arg0: i32, %arg1: i32) -> (i32, i32) {
    %c0_i32 = arith.constant 0 : i32
    %c0_i32_0 = arith.constant 0 : i32
    %c0_i32_1 = arith.constant 0 : i32
    return %c0_i32, %c0_i32_0 : i32, i32
  }
  func.func @transform_6(%arg0: i32, %arg1: i32) -> (i32, i32, i32) {
    %c0_i32 = arith.constant 0 : i32
    %c0_i32_0 = arith.constant 0 : i32
    %c0_i32_1 = arith.constant 0 : i32
    return %arg0, %c0_i32, %c0_i32_0 : i32, i32, i32
  }
}

</mosaic_0001>

<llo_original>
// kernel: tpu_custom_call.1
$region0: #{tpu_custom_call.1}
  #allocation0 [shape = 'u32[]', space=smem, size = 0x4, offset = 0x4, fixed_abs, tag = 'smem constant byte address 0x4 - core index']
  #allocation1 [shape = 'u32[144,128]{1,0:T(1,128)}', space=vmem, size = 0x12000, scoped, tag = 'internal scratch']
  #allocation2 [shape = 'f32[1,128]{1,0:T(1,128)}', space=vmem, size = 0x200, scoped, tag = 'scratch operand']
  %s0 = inlined_call_operand.vmem [shape: bf16[2,2,182,4], index: 0, kind: input, shape index: {}]
  %s1 = inlined_call_operand.vmem [shape: bf16[9,4,128], index: 1, kind: input, shape index: {}]
  %s2 = inlined_call_operand.vmem [shape: f32[1,128], index: 2, kind: input, shape index: {}]
  %s3 = inlined_call_operand.vmem [shape: f32[144,1], index: 3, kind: input, shape index: {}]
  %s4 = inlined_call_operand.vmem [shape: bf16[128,128], index: 4, kind: input, shape index: {}]
  %s5 = inlined_call_operand.vmem [shape: f32[1,128], index: 5, kind: input, shape index: {}]
  %s6 = inlined_call_operand.hbm [shape: f32[2,1,128], index: 6, kind: output, shape index: {}]
  %s7 = sld [smem:[#allocation0]]
  $region65: #{tpu_custom_call.1} parent=0
    _
  %s9 = ssub.s32 1, %s7
  %s10 = scalar_select 0, %s9, %s7
  $region1: #{tpu_custom_call.1} parent=0
    #allocation3 [shape = 'u8[1024]{0}', space=vmem, size = 0x400, scoped, tag = 'output window, operand 0']
    #allocation4 [shape = 's32[2]{0}', space=sflag, size = 0x8, scoped, tag = 'scoped memory for tpu_custom_call.1']
    %11 = vsyncpa [#allocation4], 0
    %s12 = scalar_lea.sflag [#allocation4], 1
    %13 = vsyncpa %s12, 0
    loop: start=0, step=1, limit=6
    $region2: #{tpu_custom_call.1} parent=1 // loop_pre_header
      _
    $region3: #{tpu_custom_call.1} parent=1 // loop_header
      %s15 = sphi 0, %s19
      %p16 = scmp.ge.s32.totalorder %s15, 6
      %s22 = sphi 0, %s34
      %s23 = sphi 0, %s30
      %s24 = sphi 0, %s22
      %s25 = sphi 0, %s23
      %s26 = sphi 0, %s24
      %s27 = sphi 0, %s25
      %s39 = sphi 0, %s41
      %s42 = sphi 0, %s39
      %s43 = sphi 0, %s42
      %s59 = sphi 0, %s43
      %s63 = sphi 0, %s63
      %s65 = sphi 0, %s63
      %s66 = sphi 0, %s65
      %s80 = sphi 0, %s66
      %s84 = sphi 0, %s84
      %s86 = sphi 0, %s84
      %s87 = sphi 0, %s86
      %s101 = sphi 0, %s87
      %s105 = sphi 0, %s105
      %s107 = sphi 0, %s105
      %s108 = sphi 0, %s107
      %s122 = sphi 0, %s108
      %s126 = sphi 0, %s126
      %s128 = sphi 0, %s126
      %s129 = sphi 0, %s128
      %s143 = sphi 0, %s129
      %s147 = sphi 0, %s147
      %s149 = sphi 0, %s147
      %s150 = sphi 0, %s149
      %s164 = sphi 0, %s150
      %s170 = sphi 0, %s172
      %s173 = sphi 0, %s170
      %s174 = sphi 0, %s173
      %s190 = sphi 0, %s174
    $region4: #{tpu_custom_call.1} parent=1 // loop_header_branch
      %18 = sbr.rel (%p16) target = $region8
    $region5: #{tpu_custom_call.1} parent=1 // loop_body
      %s20 = ssub.s32 %s15, 1
      %s21 = ssub.s32 %s15, 2
      %s28 = sadd.s32 1, %s23
      %p29 = scmp.ge.s32.totalorder %s28, 2
      %s30 = scalar_select %p29, 0, %s28
      %s31 = sadd.s32 1, %s22
      %s32 = scalar_select %p29, %s31, %s22
      %p33 = scmp.ge.s32.totalorder %s32, 2
      %s34 = scalar_select %p33, 0, %s32
      %s35 = ssub.s32 %s22, %s34
      %s36 = ssub.s32 %s23, %s30
      %s37 = sor.u32 %s35, %s36
      %p38 = scmp.eq.s32.totalorder %s37, 0
      %s40 = sadd.s32 %s39, 1
      %s41 = scalar_select %p38, %s39, %s40
      %p44 = pneg %p38
      %p45 = scmp.eq.s32.totalorder %s15, 3
      %p46 = por %p44, %p45
      %p47 = scmp.ne.s32.totalorder %s39, %s42
      %p48 = scmp.eq.s32.totalorder %s15, 0
      %p49 = por %p47, %p48
      %p50 = scmp.ne.s32.totalorder %s39, %s42
      %p51 = scmp.eq.s32.totalorder %s20, 3
      %p52 = por %p50, %p51
      %p53 = scmp.ne.s32.totalorder %s42, %s43
      %p54 = scmp.eq.s32.totalorder %s20, 0
      %p55 = por %p53, %p54
      %p56 = scmp.ne.s32.totalorder %s42, %s43
      %p57 = scmp.eq.s32.totalorder %s21, 3
      %p58 = por %p56, %p57
      %p60 = scmp.ne.s32.totalorder %s43, %s59
      %p61 = scmp.eq.s32.totalorder %s21, 0
      %p62 = por %p60, %p61
      %s64 = sadd.s32 %s63, 1
      %p67 = scmp.eq.s32.totalorder %s15, 3
      %p68 = scmp.ne.s32.totalorder %s63, %s65
      %p69 = scmp.eq.s32.totalorder %s15, 0
      %p70 = por %p68, %p69
      %p71 = scmp.ne.s32.totalorder %s63, %s65
      %p72 = scmp.eq.s32.totalorder %s20, 3
      %p73 = por %p71, %p72
      %p74 = scmp.ne.s32.totalorder %s65, %s66
      %p75 = scmp.eq.s32.totalorder %s20, 0
      %p76 = por %p74, %p75
      %p77 = scmp.ne.s32.totalorder %s65, %s66
      %p78 = scmp.eq.s32.totalorder %s21, 3
      %p79 = por %p77, %p78
      %p81 = scmp.ne.s32.totalorder %s66, %s80
      %p82 = scmp.eq.s32.totalorder %s21, 0
      %p83 = por %p81, %p82
      %s85 = sadd.s32 %s84, 1
      %p88 = scmp.eq.s32.totalorder %s15, 3
      %p89 = scmp.ne.s32.totalorder %s84, %s86
      %p90 = scmp.eq.s32.totalorder %s15, 0
      %p91 = por %p89, %p90
      %p92 = scmp.ne.s32.totalorder %s84, %s86
      %p93 = scmp.eq.s32.totalorder %s20, 3
      %p94 = por %p92, %p93
      %p95 = scmp.ne.s32.totalorder %s86, %s87
      %p96 = scmp.eq.s32.totalorder %s20, 0
      %p97 = por %p95, %p96
      %p98 = scmp.ne.s32.totalorder %s86, %s87
      %p99 = scmp.eq.s32.totalorder %s21, 3
      %p100 = por %p98, %p99
      %p102 = scmp.ne.s32.totalorder %s87, %s101
      %p103 = scmp.eq.s32.totalorder %s21, 0
      %p104 = por %p102, %p103
      %s106 = sadd.s32 %s105, 1
      %p109 = scmp.eq.s32.totalorder %s15, 3
      %p110 = scmp.ne.s32.totalorder %s105, %s107
      %p111 = scmp.eq.s32.totalorder %s15, 0
      %p112 = por %p110, %p111
      %p113 = scmp.ne.s32.totalorder %s105, %s107
      %p114 = scmp.eq.s32.totalorder %s20, 3
      %p115 = por %p113, %p114
      %p116 = scmp.ne.s32.totalorder %s107, %s108
      %p117 = scmp.eq.s32.totalorder %s20, 0
      %p118 = por %p116, %p117
      %p119 = scmp.ne.s32.totalorder %s107, %s108
      %p120 = scmp.eq.s32.totalorder %s21, 3
      %p121 = por %p119, %p120
      %p123 = scmp.ne.s32.totalorder %s108, %s122
      %p124 = scmp.eq.s32.totalorder %s21, 0
      %p125 = por %p123, %p124
      %s127 = sadd.s32 %s126, 1
      %p130 = scmp.eq.s32.totalorder %s15, 3
      %p131 = scmp.ne.s32.totalorder %s126, %s128
      %p132 = scmp.eq.s32.totalorder %s15, 0
      %p133 = por %p131, %p132
      %p134 = scmp.ne.s32.totalorder %s126, %s128
      %p135 = scmp.eq.s32.totalorder %s20, 3
      %p136 = por %p134, %p135
      %p137 = scmp.ne.s32.totalorder %s128, %s129
      %p138 = scmp.eq.s32.totalorder %s20, 0
      %p139 = por %p137, %p138
      %p140 = scmp.ne.s32.totalorder %s128, %s129
      %p141 = scmp.eq.s32.totalorder %s21, 3
      %p142 = por %p140, %p141
      %p144 = scmp.ne.s32.totalorder %s129, %s143
      %p145 = scmp.eq.s32.totalorder %s21, 0
      %p146 = por %p144, %p145
      %s148 = sadd.s32 %s147, 1
      %p151 = scmp.eq.s32.totalorder %s15, 3
      %p152 = scmp.ne.s32.totalorder %s147, %s149
      %p153 = scmp.eq.s32.totalorder %s15, 0
      %p154 = por %p152, %p153
      %p155 = scmp.ne.s32.totalorder %s147, %s149
      %p156 = scmp.eq.s32.totalorder %s20, 3
      %p157 = por %p155, %p156
      %p158 = scmp.ne.s32.totalorder %s149, %s150
      %p159 = scmp.eq.s32.totalorder %s20, 0
      %p160 = por %p158, %p159
      %p161 = scmp.ne.s32.totalorder %s149, %s150
      %p162 = scmp.eq.s32.totalorder %s21, 3
      %p163 = por %p161, %p162
      %p165 = scmp.ne.s32.totalorder %s150, %s164
      %p166 = scmp.eq.s32.totalorder %s21, 0
      %p167 = por %p165, %p166
      %s168 = ssub.s32 %s22, %s34
      %p169 = scmp.eq.s32.totalorder %s168, 0
      %s171 = sadd.s32 %s170, 1
      %s172 = scalar_select %p169, %s170, %s171
      %p175 = pneg %p169
      %p176 = scmp.eq.s32.totalorder %s15, 3
      %p177 = por %p175, %p176
      %p178 = scmp.ne.s32.totalorder %s170, %s173
      %p179 = scmp.eq.s32.totalorder %s15, 0
      %p180 = por %p178, %p179
      %p181 = scmp.ne.s32.totalorder %s170, %s173
      %p182 = scmp.eq.s32.totalorder %s20, 3
      %p183 = por %p181, %p182
      %p184 = scmp.ne.s32.totalorder %s173, %s174
      %p185 = scmp.eq.s32.totalorder %s20, 0
      %p186 = por %p184, %p185
      %p187 = scmp.ne.s32.totalorder %s173, %s174
      %p188 = scmp.eq.s32.totalorder %s21, 3
      %p189 = por %p187, %p188
      %p191 = scmp.ne.s32.totalorder %s174, %s190
      %p192 = scmp.eq.s32.totalorder %s21, 0
      %p193 = por %p191, %p192
      %p194 = scmp.le.s32.totalorder 1, %s15
      %p195 = scmp.lt.s32.totalorder %s15, 5
      %p196 = pnand %p194, %p195
      %p197 = pneg %p196
      // Predicated region
      $region9: #{tpu_custom_call.1} parent=5 // pred_check
        _
      $region10: #{tpu_custom_call.1} parent=5 // pred_check_branch
        %199 = sbr.rel (%p196) target = $region12
      $region11: #{tpu_custom_call.1} parent=5 // pred_region
        %s200 = ssub.s32 %s15, 1
        // Predicated region
        $region13: #{tpu_custom_call.1} parent=11 // pred_check
          %p201 = pneg %p76
        $region14: #{tpu_custom_call.1} parent=11 // pred_check_branch
          %203 = sbr.rel (%p201) target = $region16
        $region15: #{tpu_custom_call.1} parent=11 // pred_region
          _
        $region16: #{tpu_custom_call.1} parent=11 // pred_fallthru
          _
        // Predicated region
        $region17: #{tpu_custom_call.1} parent=11 // pred_check
          %p204 = pneg %p97
        $region18: #{tpu_custom_call.1} parent=11 // pred_check_branch
          %206 = sbr.rel (%p204) target = $region20
        $region19: #{tpu_custom_call.1} parent=11 // pred_region
          _
        $region20: #{tpu_custom_call.1} parent=11 // pred_fallthru
          _
        // Predicated region
        $region21: #{tpu_custom_call.1} parent=11 // pred_check
          %p207 = pneg %p118
        $region22: #{tpu_custom_call.1} parent=11 // pred_check_branch
          %209 = sbr.rel (%p207) target = $region24
        $region23: #{tpu_custom_call.1} parent=11 // pred_region
          _
        $region24: #{tpu_custom_call.1} parent=11 // pred_fallthru
          _
        // Predicated region
        $region25: #{tpu_custom_call.1} parent=11 // pred_check
          %p210 = pneg %p139
        $region26: #{tpu_custom_call.1} parent=11 // pred_check_branch
          %212 = sbr.rel (%p210) target = $region28
        $region27: #{tpu_custom_call.1} parent=11 // pred_region
          _
        $region28: #{tpu_custom_call.1} parent=11 // pred_fallthru
          _
        // Predicated region
        $region29: #{tpu_custom_call.1} parent=11 // pred_check
          %p213 = pneg %p160
        $region30: #{tpu_custom_call.1} parent=11 // pred_check_branch
          %215 = sbr.rel (%p213) target = $region32
        $region31: #{tpu_custom_call.1} parent=11 // pred_region
          _
        $region32: #{tpu_custom_call.1} parent=11 // pred_fallthru
          _
      $region12: #{tpu_custom_call.1} parent=5 // pred_fallthru
        _
      %p216 = scmp.lt.s32.totalorder %s15, 4
      // Predicated region
      $region33: #{tpu_custom_call.1} parent=5 // pred_check
        %p217 = pneg %p216
      $region34: #{tpu_custom_call.1} parent=5 // pred_check_branch
        %219 = sbr.rel (%p217) target = $region36
      $region35: #{tpu_custom_call.1} parent=5 // pred_region
        // Predicated region
        $region37: #{tpu_custom_call.1} parent=35 // pred_check
          %p220 = pneg %p49
        $region38: #{tpu_custom_call.1} parent=35 // pred_check_branch
          %222 = sbr.rel (%p220) target = $region40
        $region39: #{tpu_custom_call.1} parent=35 // pred_region
          %p223 = scmp.lt.s32.totalorder %s22, 1
          %s224 = scalar_select %p223, %s22, 1
          %p225 = scmp.lt.s32.totalorder %s23, 1
          %s226 = scalar_select %p225, %s23, 1
          %s227 = smul.addr %s226, 23
          %s228 = smul.addr %s224, 46
          %s229 = sadd.s32 %s227, %s228
          %s230 = smul.addr %s229, 4
          %s231 = scalar_lea.vmem %s0, %s230
        $region40: #{tpu_custom_call.1} parent=35 // pred_fallthru
          _
      $region36: #{tpu_custom_call.1} parent=5 // pred_fallthru
        _
      %p232 = scmp.le.s32.totalorder 1, %s15
      %p233 = scmp.lt.s32.totalorder %s15, 5
      %p234 = pnand %p232, %p233
      %p235 = pneg %p234
      // Predicated region
      $region41: #{tpu_custom_call.1} parent=5 // pred_check
        _
      $region42: #{tpu_custom_call.1} parent=5 // pred_check_branch
        %237 = sbr.rel (%p234) target = $region44
      $region43: #{tpu_custom_call.1} parent=5 // pred_region
        %s238 = ssub.s32 %s15, 1
        %p239 = scmp.lt.s32.totalorder %s24, 1
        %s240 = scalar_select %p239, %s24, 1
        %p241 = scmp.lt.s32.totalorder %s25, 1
        %s242 = scalar_select %p241, %s25, 1
        %s243 = smul.addr %s242, 23
        %s244 = smul.addr %s240, 46
        %s245 = sadd.s32 %s243, %s244
        %s246 = smul.addr %s245, 4
        %s247 = scalar_lea.vmem %s0, %s246
        %p248 = pneg %p55
        %p249 = pneg %p52
        %p250 = pneg %p76
        %p251 = pneg %p73
        %p252 = pneg %p97
        %p253 = pneg %p94
        %p254 = pneg %p118
        %p255 = pneg %p115
        %p256 = pneg %p139
        %p257 = pneg %p136
        %p258 = pneg %p160
        %p259 = pneg %p157
        %p260 = pneg %p186
        %p261 = pneg %p183
        %s262 = sand.u32 %s173, 1
        %s263 = scalar_lea.sflag [#allocation4], %s262
        %s264 = sand.u32 %s173, 1
        %s265 = scalar_lea.vmem [#allocation3], %s264
        %p266 = scmp.lt.s32.totalorder %s24, 1
        %s267 = scalar_select %p266, %s24, 1
        %p268 = scmp.lt.s32.totalorder %s25, 1
        %s269 = scalar_select %p268, %s25, 1
        %s270 = smul.addr %s269, 23
        %s271 = smul.addr %s267, 46
        %s272 = sadd.s32 %s270, %s271
        %s273 = smul.addr %s272, 4
        %s274 = scalar_lea.vmem %s0, %s273
        %p276 = scmp.eq.s32.totalorder %s25, 0
        // Predicated region
        $region45: #{tpu_custom_call.1} parent=43 // pred_check
          %p277 = pneg %p276
        $region46: #{tpu_custom_call.1} parent=43 // pred_check_branch
          %279 = sbr.rel (%p277) target = $region48
        $region47: #{tpu_custom_call.1} parent=43 // pred_region
          %280 = vst [vmem:[#allocation2] sm:$0x1] 0.0
        $region48: #{tpu_custom_call.1} parent=43 // pred_fallthru
          _
        %v281 = vld [vmem:[%s274] sm:$0xf]
        %v282 = vld [vmem:[%s274 + $0x4] sm:$0xf]
        %v283 = vld [vmem:[%s274 + $0x8] sm:$0xf]
        %v284 = vld [vmem:[%s274 + $0xc] sm:$0xf]
        %v285 = vld [vmem:[%s274 + $0x10] sm:$0xf]
        %v286 = vld [vmem:[%s274 + $0x14] sm:$0xf]
        %v287 = vld [vmem:[%s274 + $0x18] sm:$0xf]
        %v288 = vld [vmem:[%s274 + $0x1c] sm:$0xf]
        %v289 = vld [vmem:[%s274 + $0x20] sm:$0xf]
        %v290 = vld [vmem:[%s274 + $0x24] sm:$0xf]
        %v291 = vld [vmem:[%s274 + $0x28] sm:$0xf]
        %v292 = vld [vmem:[%s274 + $0x2c] sm:$0xf]
        %v293 = vld [vmem:[%s274 + $0x30] sm:$0xf]
        %v294 = vld [vmem:[%s274 + $0x34] sm:$0xf]
        %v295 = vld [vmem:[%s274 + $0x38] sm:$0xf]
        %v296 = vld [vmem:[%s274 + $0x3c] sm:$0xf]
        %v297 = vld [vmem:[%s274 + $0x40] sm:$0xf]
        %v298 = vld [vmem:[%s274 + $0x44] sm:$0xf]
        %v299 = vld [vmem:[%s274 + $0x48] sm:$0xf]
        %v300 = vld [vmem:[%s274 + $0x4c] sm:$0xf]
        %v301 = vld [vmem:[%s274 + $0x50] sm:$0xf]
        %v302 = vld [vmem:[%s274 + $0x54] sm:$0xf]
        %v303 = vld [vmem:[%s274 + $0x58] sm:$0x7]
        %v304 = vld [vmem:[%s1] sm:$0x3]
        %s305 = scalar_lea.vmem %s1, 2
        %v306 = vld [vmem:[%s305] sm:$0x3]
        %v326 = vunpack.c.l.b16 %v281
        %v327 = vunpack.c.l.b16 %v282
        %v328 = vunpack.c.l.b16 %v283
        %v329 = vunpack.c.l.b16 %v284
        %v330 = vunpack.c.l.b16 %v285
        %v331 = vunpack.c.l.b16 %v286
        %v332 = vunpack.c.l.b16 %v287
        %v333 = vunpack.c.l.b16 %v288
        %v334 = vunpack.c.l.b16 %v289
        %v335 = vunpack.c.l.b16 %v290
        %v336 = vunpack.c.l.b16 %v291
        %v337 = vunpack.c.l.b16 %v292
        %v338 = vunpack.c.l.b16 %v293
        %v339 = vunpack.c.l.b16 %v294
        %v340 = vunpack.c.l.b16 %v295
        %v341 = vunpack.c.l.b16 %v296
        %v342 = vunpack.c.l.b16 %v297
        %v343 = vunpack.c.l.b16 %v298
        %v344 = vunpack.c.l.b16 %v299
        %v345 = vpack.c.b16 %v327, %v326
        %v346 = vpack.c.b16 %v329, %v328
        %v347 = vpack.c.b16 %v331, %v330
        %v348 = vpack.c.b16 %v333, %v332
        %v349 = vpack.c.b16 %v335, %v334
        %v350 = vpack.c.b16 %v337, %v336
        %v351 = vpack.c.b16 %v339, %v338
        %v352 = vpack.c.b16 %v341, %v340
        %v353 = vpack.c.b16 %v343, %v342
        %v354 = vpack.c.b16 %v344, %v344
        %vm355 = vsmask.f32 7424
        %v357 = vshrl.u32 %v345, 16
        %v359 = vshll.u32 %v345, 16
        %v361 = vrot.slane %v359, 1
        %v362 = vor.u32 %v357, %v361
        %v364 = vshll.u32 %v346, 16
        %v366 = vrot.slane %v364, 1
        %v367 = vsel %vm355, %v362, %v366
        %v368 = vshrl.u32 %v346, 16
        %v370 = vor.u32 %v368, %v366
        %v372 = vshll.u32 %v347, 16
        %v374 = vrot.slane %v372, 1
        %v375 = vsel %vm355, %v370, %v374
        %v376 = vshrl.u32 %v347, 16
        %v378 = vor.u32 %v376, %v374
        %v380 = vshll.u32 %v348, 16
        %v382 = vrot.slane %v380, 1
        %v383 = vsel %vm355, %v378, %v382
        %v384 = vshrl.u32 %v348, 16
        %v386 = vor.u32 %v384, %v382
        %v388 = vshll.u32 %v349, 16
        %v390 = vrot.slane %v388, 1
        %v391 = vsel %vm355, %v386, %v390
        %v392 = vshrl.u32 %v349, 16
        %v394 = vor.u32 %v392, %v390
        %v396 = vshll.u32 %v350, 16
        %v398 = vrot.slane %v396, 1
        %v399 = vsel %vm355, %v394, %v398
        %v400 = vshrl.u32 %v350, 16
        %v402 = vor.u32 %v400, %v398
        %v404 = vshll.u32 %v351, 16
        %v406 = vrot.slane %v404, 1
        %v407 = vsel %vm355, %v402, %v406
        %v408 = vshrl.u32 %v351, 16
        %v410 = vor.u32 %v408, %v406
        %v412 = vshll.u32 %v352, 16
        %v414 = vrot.slane %v412, 1
        %v415 = vsel %vm355, %v410, %v414
        %v416 = vshrl.u32 %v352, 16
        %v418 = vor.u32 %v416, %v414
        %v420 = vshll.u32 %v353, 16
        %v422 = vrot.slane %v420, 1
        %v423 = vsel %vm355, %v418, %v422
        %v424 = vshrl.u32 %v353, 16
        %v426 = vor.u32 %v424, %v422
        %v428 = vshll.u32 %v354, 16
        %v430 = vrot.slane %v428, 1
        %v431 = vsel %vm355, %v426, %v430
        %vm432 = vcmask 31744
        %v434 = vsel %vm432, %v367, 0
        %v437 = vsel %vm432, %v375, 0
        %v440 = vsel %vm432, %v383, 0
        %v443 = vsel %vm432, %v391, 0
        %v446 = vsel %vm432, %v399, 0
        %v449 = vsel %vm432, %v407, 0
        %v452 = vsel %vm432, %v415, 0
        %v455 = vsel %vm432, %v423, 0
        %v458 = vsel %vm432, %v431, 0
        %vm460 = vcmask 1041408
        %v462 = vsel %vm460, %v306, 0
        %464 = vmatprep.subr.bf16.mxu0 0
        %465 = vmatpush1.bf16.msra.mxu0 %v462
        %466 = vmatprep.subr.bf16.mxu0 0
        %467 = vmatpush1.bf16.msra.mxu0 0
        %468 = vmatprep.subr.bf16.mxu0 0
        %469 = vmatpush1.bf16.msra.mxu0 0
        %470 = vmatprep.subr.bf16.mxu0 0
        %471 = vmatpush1.bf16.msra.mxu0 0
        %472 = vmatprep.subr.bf16.mxu0 0
        %473 = vmatpush1.bf16.msra.mxu0 0
        %474 = vmatprep.subr.bf16.mxu0 0
        %475 = vmatpush1.bf16.msra.mxu0 0
        %476 = vmatprep.subr.bf16.mxu0 0
        %477 = vmatpush1.bf16.msra.mxu0 0
        %478 = vmatprep.subr.bf16.mxu0 0
        %479 = vmatpush1.bf16.msra.mxu0 0
        %480 = vmatprep.subr.bf16.mxu0 0
        %481 = vmatpush1.bf16.msra.mxu0 0
        %482 = vmatprep.subr.bf16.mxu0 0
        %483 = vmatpush1.bf16.msra.mxu0 0
        %484 = vmatprep.subr.bf16.mxu0 0
        %485 = vmatpush1.bf16.msra.mxu0 0
        %486 = vmatprep.subr.bf16.mxu0 0
        %487 = vmatpush1.bf16.msra.mxu0 0
        %488 = vmatprep.subr.bf16.mxu0 0
        %489 = vmatpush1.bf16.msra.mxu0 0
        %490 = vmatprep.subr.bf16.mxu0 0
        %491 = vmatpush1.bf16.msra.mxu0 0
        %492 = vmatprep.subr.bf16.mxu0 0
        %493 = vmatpush1.bf16.msra.mxu0 0
        %494 = vmatprep.subr.bf16.mxu0 0
        %495 = vmatpush1.bf16.msra.mxu0 0
        %496 = vmatprep.mubr.bf16.mxu0 0
        %497 = vmatmul.mubr.bf16.gmra.mrb[0].mxu0 %v434
        %v498 = vpop.f32.mrb[0].mxu0
        %v499 = vadd.f32 0.0, %v498
        %v500 = vpop.f32.mrb[0].mxu0
        %v501 = vpop.f32.mrb[0].mxu0
        %v502 = vadd.f32 0.0, %v501
        %v503 = vpop.f32.mrb[0].mxu0
        %504 = vmatprep.mubr.bf16.mxu0 0
        %505 = vmatmul.mubr.bf16.gmra.mrb[0].mxu0 %v437
        %v506 = vpop.f32.mrb[0].mxu0
        %v507 = vadd.f32 0.0, %v506
        %v508 = vpop.f32.mrb[0].mxu0
        %v509 = vpop.f32.mrb[0].mxu0
        %v510 = vadd.f32 0.0, %v509
        %v511 = vpop.f32.mrb[0].mxu0
        %512 = vmatprep.mubr.bf16.mxu0 0
        %513 = vmatmul.mubr.bf16.gmra.mrb[0].mxu0 %v440
        %v514 = vpop.f32.mrb[0].mxu0
        %v515 = vadd.f32 0.0, %v514
        %v516 = vpop.f32.mrb[0].mxu0
        %v517 = vpop.f32.mrb[0].mxu0
        %v518 = vadd.f32 0.0, %v517
        %v519 = vpop.f32.mrb[0].mxu0
        %520 = vmatprep.mubr.bf16.mxu0 0
        %521 = vmatmul.mubr.bf16.gmra.mrb[0].mxu0 %v443
        %v522 = vpop.f32.mrb[0].mxu0
        %v523 = vadd.f32 0.0, %v522
        %v524 = vpop.f32.mrb[0].mxu0
        %v525 = vpop.f32.mrb[0].mxu0
        %v526 = vadd.f32 0.0, %v525
        %v527 = vpop.f32.mrb[0].mxu0
        %528 = vmatprep.mubr.bf16.mxu0 0
        %529 = vmatmul.mubr.bf16.gmra.mrb[0].mxu0 %v446
        %v530 = vpop.f32.mrb[0].mxu0
        %v531 = vadd.f32 0.0, %v530
        %v532 = vpop.f32.mrb[0].mxu0
        %v533 = vpop.f32.mrb[0].mxu0
        %v534 = vadd.f32 0.0, %v533
        %v535 = vpop.f32.mrb[0].mxu0
        %536 = vmatprep.mubr.bf16.mxu0 0
        %537 = vmatmul.mubr.bf16.gmra.mrb[0].mxu0 %v449
        %v538 = vpop.f32.mrb[0].mxu0
        %v539 = vadd.f32 0.0, %v538
        %v540 = vpop.f32.mrb[0].mxu0
        %v541 = vpop.f32.mrb[0].mxu0
        %v542 = vadd.f32 0.0, %v541
        %v543 = vpop.f32.mrb[0].mxu0
        %544 = vmatprep.mubr.bf16.mxu0 0
        %545 = vmatmul.mubr.bf16.gmra.mrb[0].mxu0 %v452
        %v546 = vpop.f32.mrb[0].mxu0
        %v547 = vadd.f32 0.0, %v546
        %v548 = vpop.f32.mrb[0].mxu0
        %v549 = vpop.f32.mrb[0].mxu0
        %v550 = vadd.f32 0.0, %v549
        %v551 = vpop.f32.mrb[0].mxu0
        %552 = vmatprep.mubr.bf16.mxu0 0
        %553 = vmatmul.mubr.bf16.gmra.mrb[0].mxu0 %v455
        %v554 = vpop.f32.mrb[0].mxu0
        %v555 = vadd.f32 0.0, %v554
        %v556 = vpop.f32.mrb[0].mxu0
        %v557 = vpop.f32.mrb[0].mxu0
        %v558 = vadd.f32 0.0, %v557
        %v559 = vpop.f32.mrb[0].mxu0
        %560 = vmatprep.mubr.bf16.mxu0 0
        %561 = vmatmul.mubr.bf16.gmra.mrb[0].mxu0 %v458
        %v562 = vpop.f32.mrb[0].mxu0
        %v563 = vadd.f32 0.0, %v562
        %v564 = vpop.f32.mrb[0].mxu0
        %v565 = vpop.f32.mrb[0].mxu0
        %v566 = vadd.f32 0.0, %v565
        %v567 = vpop.f32.mrb[0].mxu0
        %568 = vdwg.mxu0
        %v569 = vsel %vm432, %v345, 0
        %v571 = vsel %vm432, %v346, 0
        %v573 = vsel %vm432, %v347, 0
        %v575 = vsel %vm432, %v348, 0
        %v577 = vsel %vm432, %v349, 0
        %v579 = vsel %vm432, %v350, 0
        %v581 = vsel %vm432, %v351, 0
        %v583 = vsel %vm432, %v352, 0
        %v585 = vsel %vm432, %v353, 0
        %v588 = vsel %vm460, %v304, 0
        %590 = vmatprep.subr.bf16.mxu0 0
        %591 = vmatpush1.bf16.msra.mxu0 %v588
        %592 = vmatprep.subr.bf16.mxu0 0
        %593 = vmatpush1.bf16.msra.mxu0 0
        %594 = vmatprep.subr.bf16.mxu0 0
        %595 = vmatpush1.bf16.msra.mxu0 0
        %596 = vmatprep.subr.bf16.mxu0 0
        %597 = vmatpush1.bf16.msra.mxu0 0
        %598 = vmatprep.subr.bf16.mxu0 0
        %599 = vmatpush1.bf16.msra.mxu0 0
        %600 = vmatprep.subr.bf16.mxu0 0
        %601 = vmatpush1.bf16.msra.mxu0 0
        %602 = vmatprep.subr.bf16.mxu0 0
        %603 = vmatpush1.bf16.msra.mxu0 0
        %604 = vmatprep.subr.bf16.mxu0 0
        %605 = vmatpush1.bf16.msra.mxu0 0
        %606 = vmatprep.subr.bf16.mxu0 0
        %607 = vmatpush1.bf16.msra.mxu0 0
        %608 = vmatprep.subr.bf16.mxu0 0
        %609 = vmatpush1.bf16.msra.mxu0 0
        %610 = vmatprep.subr.bf16.mxu0 0
        %611 = vmatpush1.bf16.msra.mxu0 0
        %612 = vmatprep.subr.bf16.mxu0 0
        %613 = vmatpush1.bf16.msra.mxu0 0
        %614 = vmatprep.subr.bf16.mxu0 0
        %615 = vmatpush1.bf16.msra.mxu0 0
        %616 = vmatprep.subr.bf16.mxu0 0
        %617 = vmatpush1.bf16.msra.mxu0 0
        %618 = vmatprep.subr.bf16.mxu0 0
        %619 = vmatpush1.bf16.msra.mxu0 0
        %620 = vmatprep.subr.bf16.mxu0 0
        %621 = vmatpush1.bf16.msra.mxu0 0
        %622 = vmatprep.mubr.bf16.mxu0 0
        %623 = vmatmul.mubr.bf16.gmra.mrb[0].mxu0 %v569
        %v624 = vpop.f32.mrb[0].mxu0
        %v625 = vadd.f32 %v499, %v624
        %v626 = vpop.f32.mrb[0].mxu0
        %v627 = vpop.f32.mrb[0].mxu0
        %v628 = vadd.f32 %v502, %v627
        %v629 = vpop.f32.mrb[0].mxu0
        %630 = vmatprep.mubr.bf16.mxu0 0
        %631 = vmatmul.mubr.bf16.gmra.mrb[0].mxu0 %v571
        %v632 = vpop.f32.mrb[0].mxu0
        %v633 = vadd.f32 %v507, %v632
        %v634 = vpop.f32.mrb[0].mxu0
        %v635 = vpop.f32.mrb[0].mxu0
        %v636 = vadd.f32 %v510, %v635
        %v637 = vpop.f32.mrb[0].mxu0
        %638 = vmatprep.mubr.bf16.mxu0 0
        %639 = vmatmul.mubr.bf16.gmra.mrb[0].mxu0 %v573
        %v640 = vpop.f32.mrb[0].mxu0
        %v641 = vadd.f32 %v515, %v640
        %v642 = vpop.f32.mrb[0].mxu0
        %v643 = vpop.f32.mrb[0].mxu0
        %v644 = vadd.f32 %v518, %v643
        %v645 = vpop.f32.mrb[0].mxu0
        %646 = vmatprep.mubr.bf16.mxu0 0
        %647 = vmatmul.mubr.bf16.gmra.mrb[0].mxu0 %v575
        %v648 = vpop.f32.mrb[0].mxu0
        %v649 = vadd.f32 %v523, %v648
        %v650 = vpop.f32.mrb[0].mxu0
        %v651 = vpop.f32.mrb[0].mxu0
        %v652 = vadd.f32 %v526, %v651
        %v653 = vpop.f32.mrb[0].mxu0
        %654 = vmatprep.mubr.bf16.mxu0 0
        %655 = vmatmul.mubr.bf16.gmra.mrb[0].mxu0 %v577
        %v656 = vpop.f32.mrb[0].mxu0
        %v657 = vadd.f32 %v531, %v656
        %v658 = vpop.f32.mrb[0].mxu0
        %v659 = vpop.f32.mrb[0].mxu0
        %v660 = vadd.f32 %v534, %v659
        %v661 = vpop.f32.mrb[0].mxu0
        %662 = vmatprep.mubr.bf16.mxu0 0
        %663 = vmatmul.mubr.bf16.gmra.mrb[0].mxu0 %v579
        %v664 = vpop.f32.mrb[0].mxu0
        %v665 = vadd.f32 %v539, %v664
        %v666 = vpop.f32.mrb[0].mxu0
        %v667 = vpop.f32.mrb[0].mxu0
        %v668 = vadd.f32 %v542, %v667
        %v669 = vpop.f32.mrb[0].mxu0
        %670 = vmatprep.mubr.bf16.mxu0 0
        %671 = vmatmul.mubr.bf16.gmra.mrb[0].mxu0 %v581
        %v672 = vpop.f32.mrb[0].mxu0
        %v673 = vadd.f32 %v547, %v672
        %v674 = vpop.f32.mrb[0].mxu0
        %v675 = vpop.f32.mrb[0].mxu0
        %v676 = vadd.f32 %v550, %v675
        %v677 = vpop.f32.mrb[0].mxu0
        %678 = vmatprep.mubr.bf16.mxu0 0
        %679 = vmatmul.mubr.bf16.gmra.mrb[0].mxu0 %v583
        %v680 = vpop.f32.mrb[0].mxu0
        %v681 = vadd.f32 %v555, %v680
        %v682 = vpop.f32.mrb[0].mxu0
        %v683 = vpop.f32.mrb[0].mxu0
        %v684 = vadd.f32 %v558, %v683
        %v685 = vpop.f32.mrb[0].mxu0
        %686 = vmatprep.mubr.bf16.mxu0 0
        %687 = vmatmul.mubr.bf16.gmra.mrb[0].mxu0 %v585
        %v688 = vpop.f32.mrb[0].mxu0
        %v689 = vadd.f32 %v563, %v688
        %v690 = vpop.f32.mrb[0].mxu0
        %v691 = vpop.f32.mrb[0].mxu0
        %v692 = vadd.f32 %v566, %v691
        %v693 = vpop.f32.mrb[0].mxu0
        %694 = vdwg.mxu0
        %s695 = scalar_lea.vmem %s1, 4
        %v696 = vld [vmem:[%s695] sm:$0x3]
        %vm697 = vcmask 1046528
        %v698 = vrot.slane %v345, 1
        %v699 = vrot.slane %v346, 1
        %v700 = vsel %vm697, %v698, %v699
        %v701 = vrot.slane %v347, 1
        %v702 = vsel %vm697, %v699, %v701
        %v703 = vrot.slane %v348, 1
        %v704 = vsel %vm697, %v701, %v703
        %v705 = vrot.slane %v349, 1
        %v706 = vsel %vm697, %v703, %v705
        %v707 = vrot.slane %v350, 1
        %v708 = vsel %vm697, %v705, %v707
        %v709 = vrot.slane %v351, 1
        %v710 = vsel %vm697, %v707, %v709
        %v711 = vrot.slane %v352, 1
        %v712 = vsel %vm697, %v709, %v711
        %v713 = vrot.slane %v353, 1
        %v714 = vsel %vm697, %v711, %v713
        %v715 = vrot.slane %v354, 1
        %v716 = vsel %vm697, %v713, %v715
        %v718 = vsel %vm432, %v700, 0
        %v721 = vsel %vm432, %v702, 0
        %v724 = vsel %vm432, %v704, 0
        %v727 = vsel %vm432, %v706, 0
        %v730 = vsel %vm432, %v708, 0
        %v733 = vsel %vm432, %v710, 0
        %v736 = vsel %vm432, %v712, 0
        %v739 = vsel %vm432, %v714, 0
        %v742 = vsel %vm432, %v716, 0
        %v745 = vsel %vm460, %v696, 0
        %747 = vmatprep.subr.bf16.mxu0 0
        %748 = vmatpush1.bf16.msra.mxu0 %v745
        %749 = vmatprep.subr.bf16.mxu0 0
        %750 = vmatpush1.bf16.msra.mxu0 0
        %751 = vmatprep.subr.bf16.mxu0 0
        %752 = vmatpush1.bf16.msra.mxu0 0
        %753 = vmatprep.subr.bf16.mxu0 0
        %754 = vmatpush1.bf16.msra.mxu0 0
        %755 = vmatprep.subr.bf16.mxu0 0
        %756 = vmatpush1.bf16.msra.mxu0 0
        %757 = vmatprep.subr.bf16.mxu0 0
        %758 = vmatpush1.bf16.msra.mxu0 0
        %759 = vmatprep.subr.bf16.mxu0 0
        %760 = vmatpush1.bf16.msra.mxu0 0
        %761 = vmatprep.subr.bf16.mxu0 0
        %762 = vmatpush1.bf16.msra.mxu0 0
        %763 = vmatprep.subr.bf16.mxu0 0
        %764 = vmatpush1.bf16.msra.mxu0 0
        %765 = vmatprep.subr.bf16.mxu0 0
        %766 = vmatpush1.bf16.msra.mxu0 0
        %767 = vmatprep.subr.bf16.mxu0 0
        %768 = vmatpush1.bf16.msra.mxu0 0
        %769 = vmatprep.subr.bf16.mxu0 0
        %770 = vmatpush1.bf16.msra.mxu0 0
        %771 = vmatprep.subr.bf16.mxu0 0
        %772 = vmatpush1.bf16.msra.mxu0 0
        %773 = vmatprep.subr.bf16.mxu0 0
        %774 = vmatpush1.bf16.msra.mxu0 0
        %775 = vmatprep.subr.bf16.mxu0 0
        %776 = vmatpush1.bf16.msra.mxu0 0
        %777 = vmatprep.subr.bf16.mxu0 0
        %778 = vmatpush1.bf16.msra.mxu0 0
        %779 = vmatprep.mubr.bf16.mxu0 0
        %780 = vmatmul.mubr.bf16.gmra.mrb[0].mxu0 %v718
        %v781 = vpop.f32.mrb[0].mxu0
        %v782 = vadd.f32 0.0, %v781
        %v783 = vpop.f32.mrb[0].mxu0
        %v784 = vpop.f32.mrb[0].mxu0
        %v785 = vadd.f32 0.0, %v784
        %v786 = vpop.f32.mrb[0].mxu0
        %787 = vmatprep.mubr.bf16.mxu0 0
        %788 = vmatmul.mubr.bf16.gmra.mrb[0].mxu0 %v721
        %v789 = vpop.f32.mrb[0].mxu0
        %v790 = vadd.f32 0.0, %v789
        %v791 = vpop.f32.mrb[0].mxu0
        %v792 = vpop.f32.mrb[0].mxu0
        %v793 = vadd.f32 0.0, %v792
        %v794 = vpop.f32.mrb[0].mxu0
        %795 = vmatprep.mubr.bf16.mxu0 0
        %796 = vmatmul.mubr.bf16.gmra.mrb[0].mxu0 %v724
        %v797 = vpop.f32.mrb[0].mxu0
        %v798 = vadd.f32 0.0, %v797
        %v799 = vpop.f32.mrb[0].mxu0
        %v800 = vpop.f32.mrb[0].mxu0
        %v801 = vadd.f32 0.0, %v800
        %v802 = vpop.f32.mrb[0].mxu0
        %803 = vmatprep.mubr.bf16.mxu0 0
        %804 = vmatmul.mubr.bf16.gmra.mrb[0].mxu0 %v727
        %v805 = vpop.f32.mrb[0].mxu0
        %v806 = vadd.f32 0.0, %v805
        %v807 = vpop.f32.mrb[0].mxu0
        %v808 = vpop.f32.mrb[0].mxu0
        %v809 = vadd.f32 0.0, %v808
        %v810 = vpop.f32.mrb[0].mxu0
        %811 = vmatprep.mubr.bf16.mxu0 0
        %812 = vmatmul.mubr.bf16.gmra.mrb[0].mxu0 %v730
        %v813 = vpop.f32.mrb[0].mxu0
        %v814 = vadd.f32 0.0, %v813
        %v815 = vpop.f32.mrb[0].mxu0
        %v816 = vpop.f32.mrb[0].mxu0
        %v817 = vadd.f32 0.0, %v816
        %v818 = vpop.f32.mrb[0].mxu0
        %819 = vmatprep.mubr.bf16.mxu0 0
        %820 = vmatmul.mubr.bf16.gmra.mrb[0].mxu0 %v733
        %v821 = vpop.f32.mrb[0].mxu0
        %v822 = vadd.f32 0.0, %v821
        %v823 = vpop.f32.mrb[0].mxu0
        %v824 = vpop.f32.mrb[0].mxu0
        %v825 = vadd.f32 0.0, %v824
        %v826 = vpop.f32.mrb[0].mxu0
        %827 = vmatprep.mubr.bf16.mxu0 0
        %828 = vmatmul.mubr.bf16.gmra.mrb[0].mxu0 %v736
        %v829 = vpop.f32.mrb[0].mxu0
        %v830 = vadd.f32 0.0, %v829
        %v831 = vpop.f32.mrb[0].mxu0
        %v832 = vpop.f32.mrb[0].mxu0
        %v833 = vadd.f32 0.0, %v832
        %v834 = vpop.f32.mrb[0].mxu0
        %835 = vmatprep.mubr.bf16.mxu0 0
        %836 = vmatmul.mubr.bf16.gmra.mrb[0].mxu0 %v739
        %v837 = vpop.f32.mrb[0].mxu0
        %v838 = vadd.f32 0.0, %v837
        %v839 = vpop.f32.mrb[0].mxu0
        %v840 = vpop.f32.mrb[0].mxu0
        %v841 = vadd.f32 0.0, %v840
        %v842 = vpop.f32.mrb[0].mxu0
        %843 = vmatprep.mubr.bf16.mxu0 0
        %844 = vmatmul.mubr.bf16.gmra.mrb[0].mxu0 %v742
        %v845 = vpop.f32.mrb[0].mxu0
        %v846 = vadd.f32 0.0, %v845
        %v847 = vpop.f32.mrb[0].mxu0
        %v848 = vpop.f32.mrb[0].mxu0
        %v849 = vadd.f32 0.0, %v848
        %v850 = vpop.f32.mrb[0].mxu0
        %851 = vdwg.mxu0
        %v852 = vadd.f32 %v625, %v782
        %v853 = vadd.f32 %v628, %v785
        %v854 = vadd.f32 %v633, %v790
        %v855 = vadd.f32 %v636, %v793
        %v856 = vadd.f32 %v641, %v798
        %v857 = vadd.f32 %v644, %v801
        %v858 = vadd.f32 %v649, %v806
        %v859 = vadd.f32 %v652, %v809
        %v860 = vadd.f32 %v657, %v814
        %v861 = vadd.f32 %v660, %v817
        %v862 = vadd.f32 %v665, %v822
        %v863 = vadd.f32 %v668, %v825
        %v864 = vadd.f32 %v673, %v830
        %v865 = vadd.f32 %v676, %v833
        %v866 = vadd.f32 %v681, %v838
        %v867 = vadd.f32 %v684, %v841
        %v868 = vadd.f32 %v689, %v846
        %v869 = vadd.f32 %v692, %v849
        %s870 = scalar_lea.vmem %s1, 6
        %v871 = vld [vmem:[%s870] sm:$0x3]
        %v874 = vunpack.c.l.b16 %v300
        %v875 = vunpack.c.l.b16 %v301
        %v876 = vpack.c.b16 %v874, %v344
        %v877 = vpack.c.b16 %v875, %v875
        %v878 = vrot.slane %v876, 1
        %v879 = vsel %vm697, %v713, %v878
        %v880 = vrot.slane %v877, 1
        %v881 = vsel %vm697, %v878, %v880
        %v883 = vsel %vm432, %v879, 0
        %v886 = vsel %vm432, %v881, 0
        %v889 = vsel %vm460, %v871, 0
        %891 = vmatprep.subr.bf16.mxu0 0
        %892 = vmatpush1.bf16.msra.mxu0 %v889
        %893 = vmatprep.subr.bf16.mxu0 0
        %894 = vmatpush1.bf16.msra.mxu0 0
        %895 = vmatprep.subr.bf16.mxu0 0
        %896 = vmatpush1.bf16.msra.mxu0 0
        %897 = vmatprep.subr.bf16.mxu0 0
        %898 = vmatpush1.bf16.msra.mxu0 0
        %899 = vmatprep.subr.bf16.mxu0 0
        %900 = vmatpush1.bf16.msra.mxu0 0
        %901 = vmatprep.subr.bf16.mxu0 0
        %902 = vmatpush1.bf16.msra.mxu0 0
        %903 = vmatprep.subr.bf16.mxu0 0
        %904 = vmatpush1.bf16.msra.mxu0 0
        %905 = vmatprep.subr.bf16.mxu0 0
        %906 = vmatpush1.bf16.msra.mxu0 0
        %907 = vmatprep.subr.bf16.mxu0 0
        %908 = vmatpush1.bf16.msra.mxu0 0
        %909 = vmatprep.subr.bf16.mxu0 0
        %910 = vmatpush1.bf16.msra.mxu0 0
        %911 = vmatprep.subr.bf16.mxu0 0
        %912 = vmatpush1.bf16.msra.mxu0 0
        %913 = vmatprep.subr.bf16.mxu0 0
        %914 = vmatpush1.bf16.msra.mxu0 0
        %915 = vmatprep.subr.bf16.mxu0 0
        %916 = vmatpush1.bf16.msra.mxu0 0
        %917 = vmatprep.subr.bf16.mxu0 0
        %918 = vmatpush1.bf16.msra.mxu0 0
        %919 = vmatprep.subr.bf16.mxu0 0
        %920 = vmatpush1.bf16.msra.mxu0 0
        %921 = vmatprep.subr.bf16.mxu0 0
        %922 = vmatpush1.bf16.msra.mxu0 0
        %923 = vmatprep.mubr.bf16.mxu0 0
        %924 = vmatmul.mubr.bf16.gmra.mrb[0].mxu0 %v721
        %v925 = vpop.f32.mrb[0].mxu0
        %v926 = vadd.f32 0.0, %v925
        %v927 = vpop.f32.mrb[0].mxu0
        %v928 = vpop.f32.mrb[0].mxu0
        %v929 = vadd.f32 0.0, %v928
        %v930 = vpop.f32.mrb[0].mxu0
        %931 = vmatprep.mubr.bf16.mxu0 0
        %932 = vmatmul.mubr.bf16.gmra.mrb[0].mxu0 %v724
        %v933 = vpop.f32.mrb[0].mxu0
        %v934 = vadd.f32 0.0, %v933
        %v935 = vpop.f32.mrb[0].mxu0
        %v936 = vpop.f32.mrb[0].mxu0
        %v937 = vadd.f32 0.0, %v936
        %v938 = vpop.f32.mrb[0].mxu0
        %939 = vmatprep.mubr.bf16.mxu0 0
        %940 = vmatmul.mubr.bf16.gmra.mrb[0].mxu0 %v727
        %v941 = vpop.f32.mrb[0].mxu0
        %v942 = vadd.f32 0.0, %v941
        %v943 = vpop.f32.mrb[0].mxu0
        %v944 = vpop.f32.mrb[0].mxu0
        %v945 = vadd.f32 0.0, %v944
        %v946 = vpop.f32.mrb[0].mxu0
        %947 = vmatprep.mubr.bf16.mxu0 0
        %948 = vmatmul.mubr.bf16.gmra.mrb[0].mxu0 %v730
        %v949 = vpop.f32.mrb[0].mxu0
        %v950 = vadd.f32 0.0, %v949
        %v951 = vpop.f32.mrb[0].mxu0
        %v952 = vpop.f32.mrb[0].mxu0
        %v953 = vadd.f32 0.0, %v952
        %v954 = vpop.f32.mrb[0].mxu0
        %955 = vmatprep.mubr.bf16.mxu0 0
        %956 = vmatmul.mubr.bf16.gmra.mrb[0].mxu0 %v733
        %v957 = vpop.f32.mrb[0].mxu0
        %v958 = vadd.f32 0.0, %v957
        %v959 = vpop.f32.mrb[0].mxu0
        %v960 = vpop.f32.mrb[0].mxu0
        %v961 = vadd.f32 0.0, %v960
        %v962 = vpop.f32.mrb[0].mxu0
        %963 = vmatprep.mubr.bf16.mxu0 0
        %964 = vmatmul.mubr.bf16.gmra.mrb[0].mxu0 %v736
        %v965 = vpop.f32.mrb[0].mxu0
        %v966 = vadd.f32 0.0, %v965
        %v967 = vpop.f32.mrb[0].mxu0
        %v968 = vpop.f32.mrb[0].mxu0
        %v969 = vadd.f32 0.0, %v968
        %v970 = vpop.f32.mrb[0].mxu0
        %971 = vmatprep.mubr.bf16.mxu0 0
        %972 = vmatmul.mubr.bf16.gmra.mrb[0].mxu0 %v739
        %v973 = vpop.f32.mrb[0].mxu0
        %v974 = vadd.f32 0.0, %v973
        %v975 = vpop.f32.mrb[0].mxu0
        %v976 = vpop.f32.mrb[0].mxu0
        %v977 = vadd.f32 0.0, %v976
        %v978 = vpop.f32.mrb[0].mxu0
        %979 = vmatprep.mubr.bf16.mxu0 0
        %980 = vmatmul.mubr.bf16.gmra.mrb[0].mxu0 %v883
        %v981 = vpop.f32.mrb[0].mxu0
        %v982 = vadd.f32 0.0, %v981
        %v983 = vpop.f32.mrb[0].mxu0
        %v984 = vpop.f32.mrb[0].mxu0
        %v985 = vadd.f32 0.0, %v984
        %v986 = vpop.f32.mrb[0].mxu0
        %987 = vmatprep.mubr.bf16.mxu0 0
        %988 = vmatmul.mubr.bf16.gmra.mrb[0].mxu0 %v886
        %v989 = vpop.f32.mrb[0].mxu0
        %v990 = vadd.f32 0.0, %v989
        %v991 = vpop.f32.mrb[0].mxu0
        %v992 = vpop.f32.mrb[0].mxu0
        %v993 = vadd.f32 0.0, %v992
        %v994 = vpop.f32.mrb[0].mxu0
        %995 = vdwg.mxu0
        %v996 = vadd.f32 %v852, %v926
        %v997 = vadd.f32 %v853, %v929
        %v998 = vadd.f32 %v854, %v934
        %v999 = vadd.f32 %v855, %v937
        %v1000 = vadd.f32 %v856, %v942
        %v1001 = vadd.f32 %v857, %v945
        %v1002 = vadd.f32 %v858, %v950
        %v1003 = vadd.f32 %v859, %v953
        %v1004 = vadd.f32 %v860, %v958
        %v1005 = vadd.f32 %v861, %v961
        %v1006 = vadd.f32 %v862, %v966
        %v1007 = vadd.f32 %v863, %v969
        %v1008 = vadd.f32 %v864, %v974
        %v1009 = vadd.f32 %v865, %v977
        %v1010 = vadd.f32 %v866, %v982
        %v1011 = vadd.f32 %v867, %v985
        %v1012 = vadd.f32 %v868, %v990
        %v1013 = vadd.f32 %v869, %v993
        %s1014 = scalar_lea.vmem %s1, 8
        %v1015 = vld [vmem:[%s1014] sm:$0x3]
        %vm1016 = vsmask.f32 6400
        %v1017 = vrot.slane %v368, 1
        %v1018 = vrot.slane %v364, 2
        %v1019 = vor.u32 %v1017, %v1018
        %v1020 = vrot.slane %v376, 1
        %v1021 = vrot.slane %v372, 2
        %v1022 = vor.u32 %v1020, %v1021
        %v1023 = vsel %vm1016, %v1019, %v1022
        %v1024 = vrot.slane %v384, 1
        %v1025 = vrot.slane %v380, 2
        %v1026 = vor.u32 %v1024, %v1025
        %v1027 = vsel %vm1016, %v1022, %v1026
        %v1028 = vrot.slane %v392, 1
        %v1029 = vrot.slane %v388, 2
        %v1030 = vor.u32 %v1028, %v1029
        %v1031 = vsel %vm1016, %v1026, %v1030
        %v1032 = vrot.slane %v400, 1
        %v1033 = vrot.slane %v396, 2
        %v1034 = vor.u32 %v1032, %v1033
        %v1035 = vsel %vm1016, %v1030, %v1034
        %v1036 = vrot.slane %v408, 1
        %v1037 = vrot.slane %v404, 2
        %v1038 = vor.u32 %v1036, %v1037
        %v1039 = vsel %vm1016, %v1034, %v1038
        %v1040 = vrot.slane %v416, 1
        %v1041 = vrot.slane %v412, 2
        %v1042 = vor.u32 %v1040, %v1041
        %v1043 = vsel %vm1016, %v1038, %v1042
        %v1044 = vrot.slane %v424, 1
        %v1045 = vrot.slane %v420, 2
        %v1046 = vor.u32 %v1044, %v1045
        %v1047 = vsel %vm1016, %v1042, %v1046
        %v1049 = vshrl.u32 %v876, 16
        %v1051 = vrot.slane %v1049, 1
        %v1052 = vshll.u32 %v876, 16
        %v1054 = vrot.slane %v1052, 2
        %v1055 = vor.u32 %v1051, %v1054
        %v1056 = vsel %vm1016, %v1046, %v1055
        %v1058 = vshrl.u32 %v877, 16
        %v1060 = vrot.slane %v1058, 1
        %v1061 = vshll.u32 %v877, 16
        %v1063 = vrot.slane %v1061, 2
        %v1064 = vor.u32 %v1060, %v1063
        %v1065 = vsel %vm1016, %v1055, %v1064
        %v1067 = vsel %vm432, %v1023, 0
        %v1070 = vsel %vm432, %v1027, 0
        %v1073 = vsel %vm432, %v1031, 0
        %v1076 = vsel %vm432, %v1035, 0
        %v1079 = vsel %vm432, %v1039, 0
        %v1082 = vsel %vm432, %v1043, 0
        %v1085 = vsel %vm432, %v1047, 0
        %v1088 = vsel %vm432, %v1056, 0
        %v1091 = vsel %vm432, %v1065, 0
        %v1094 = vsel %vm460, %v1015, 0
        %1096 = vmatprep.subr.bf16.mxu0 0
        %1097 = vmatpush1.bf16.msra.mxu0 %v1094
        %1098 = vmatprep.subr.bf16.mxu0 0
        %1099 = vmatpush1.bf16.msra.mxu0 0
        %1100 = vmatprep.subr.bf16.mxu0 0
        %1101 = vmatpush1.bf16.msra.mxu0 0
        %1102 = vmatprep.subr.bf16.mxu0 0
        %1103 = vmatpush1.bf16.msra.mxu0 0
        %1104 = vmatprep.subr.bf16.mxu0 0
        %1105 = vmatpush1.bf16.msra.mxu0 0
        %1106 = vmatprep.subr.bf16.mxu0 0
        %1107 = vmatpush1.bf16.msra.mxu0 0
        %1108 = vmatprep.subr.bf16.mxu0 0
        %1109 = vmatpush1.bf16.msra.mxu0 0
        %1110 = vmatprep.subr.bf16.mxu0 0
        %1111 = vmatpush1.bf16.msra.mxu0 0
        %1112 = vmatprep.subr.bf16.mxu0 0
        %1113 = vmatpush1.bf16.msra.mxu0 0
        %1114 = vmatprep.subr.bf16.mxu0 0
        %1115 = vmatpush1.bf16.msra.mxu0 0
        %1116 = vmatprep.subr.bf16.mxu0 0
        %1117 = vmatpush1.bf16.msra.mxu0 0
        %1118 = vmatprep.subr.bf16.mxu0 0
        %1119 = vmatpush1.bf16.msra.mxu0 0
        %1120 = vmatprep.subr.bf16.mxu0 0
        %1121 = vmatpush1.bf16.msra.mxu0 0
        %1122 = vmatprep.subr.bf16.mxu0 0
        %1123 = vmatpush1.bf16.msra.mxu0 0
        %1124 = vmatprep.subr.bf16.mxu0 0
        %1125 = vmatpush1.bf16.msra.mxu0 0
        %1126 = vmatprep.subr.bf16.mxu0 0
        %1127 = vmatpush1.bf16.msra.mxu0 0
        %1128 = vmatprep.mubr.bf16.mxu0 0
        %1129 = vmatmul.mubr.bf16.gmra.mrb[0].mxu0 %v1067
        %v1130 = vpop.f32.mrb[0].mxu0
        %v1131 = vadd.f32 0.0, %v1130
        %v1132 = vpop.f32.mrb[0].mxu0
        %v1133 = vpop.f32.mrb[0].mxu0
        %v1134 = vadd.f32 0.0, %v1133
        %v1135 = vpop.f32.mrb[0].mxu0
        %1136 = vmatprep.mubr.bf16.mxu0 0
        %1137 = vmatmul.mubr.bf16.gmra.mrb[0].mxu0 %v1070
        %v1138 = vpop.f32.mrb[0].mxu0
        %v1139 = vadd.f32 0.0, %v1138
        %v1140 = vpop.f32.mrb[0].mxu0
        %v1141 = vpop.f32.mrb[0].mxu0
        %v1142 = vadd.f32 0.0, %v1141
        %v1143 = vpop.f32.mrb[0].mxu0
        %1144 = vmatprep.mubr.bf16.mxu0 0
        %1145 = vmatmul.mubr.bf16.gmra.mrb[0].mxu0 %v1073
        %v1146 = vpop.f32.mrb[0].mxu0
        %v1147 = vadd.f32 0.0, %v1146
        %v1148 = vpop.f32.mrb[0].mxu0
        %v1149 = vpop.f32.mrb[0].mxu0
        %v1150 = vadd.f32 0.0, %v1149
        %v1151 = vpop.f32.mrb[0].mxu0
        %1152 = vmatprep.mubr.bf16.mxu0 0
        %1153 = vmatmul.mubr.bf16.gmra.mrb[0].mxu0 %v1076
        %v1154 = vpop.f32.mrb[0].mxu0
        %v1155 = vadd.f32 0.0, %v1154
        %v1156 = vpop.f32.mrb[0].mxu0
        %v1157 = vpop.f32.mrb[0].mxu0
        %v1158 = vadd.f32 0.0, %v1157
        %v1159 = vpop.f32.mrb[0].mxu0
        %1160 = vmatprep.mubr.bf16.mxu0 0
        %1161 = vmatmul.mubr.bf16.gmra.mrb[0].mxu0 %v1079
        %v1162 = vpop.f32.mrb[0].mxu0
        %v1163 = vadd.f32 0.0, %v1162
        %v1164 = vpop.f32.mrb[0].mxu0
        %v1165 = vpop.f32.mrb[0].mxu0
        %v1166 = vadd.f32 0.0, %v1165
        %v1167 = vpop.f32.mrb[0].mxu0
        %1168 = vmatprep.mubr.bf16.mxu0 0
        %1169 = vmatmul.mubr.bf16.gmra.mrb[0].mxu0 %v1082
        %v1170 = vpop.f32.mrb[0].mxu0
        %v1171 = vadd.f32 0.0, %v1170
        %v1172 = vpop.f32.mrb[0].mxu0
        %v1173 = vpop.f32.mrb[0].mxu0
        %v1174 = vadd.f32 0.0, %v1173
        %v1175 = vpop.f32.mrb[0].mxu0
        %1176 = vmatprep.mubr.bf16.mxu0 0
        %1177 = vmatmul.mubr.bf16.gmra.mrb[0].mxu0 %v1085
        %v1178 = vpop.f32.mrb[0].mxu0
        %v1179 = vadd.f32 0.0, %v1178
        %v1180 = vpop.f32.mrb[0].mxu0
        %v1181 = vpop.f32.mrb[0].mxu0
        %v1182 = vadd.f32 0.0, %v1181
        %v1183 = vpop.f32.mrb[0].mxu0
        %1184 = vmatprep.mubr.bf16.mxu0 0
        %1185 = vmatmul.mubr.bf16.gmra.mrb[0].mxu0 %v1088
        %v1186 = vpop.f32.mrb[0].mxu0
        %v1187 = vadd.f32 0.0, %v1186
        %v1188 = vpop.f32.mrb[0].mxu0
        %v1189 = vpop.f32.mrb[0].mxu0
        %v1190 = vadd.f32 0.0, %v1189
        %v1191 = vpop.f32.mrb[0].mxu0
        %1192 = vmatprep.mubr.bf16.mxu0 0
        %1193 = vmatmul.mubr.bf16.gmra.mrb[0].mxu0 %v1091
        %v1194 = vpop.f32.mrb[0].mxu0
        %v1195 = vadd.f32 0.0, %v1194
        %v1196 = vpop.f32.mrb[0].mxu0
        %v1197 = vpop.f32.mrb[0].mxu0
        %v1198 = vadd.f32 0.0, %v1197
        %v1199 = vpop.f32.mrb[0].mxu0
        %1200 = vdwg.mxu0
        %v1201 = vadd.f32 %v996, %v1131
        %v1202 = vadd.f32 %v997, %v1134
        %v1203 = vadd.f32 %v998, %v1139
        %v1204 = vadd.f32 %v999, %v1142
        %v1205 = vadd.f32 %v1000, %v1147
        %v1206 = vadd.f32 %v1001, %v1150
        %v1207 = vadd.f32 %v1002, %v1155
        %v1208 = vadd.f32 %v1003, %v1158
        %v1209 = vadd.f32 %v1004, %v1163
        %v1210 = vadd.f32 %v1005, %v1166
        %v1211 = vadd.f32 %v1006, %v1171
        %v1212 = vadd.f32 %v1007, %v1174
        %v1213 = vadd.f32 %v1008, %v1179
        %v1214 = vadd.f32 %v1009, %v1182
        %v1215 = vadd.f32 %v1010, %v1187
        %v1216 = vadd.f32 %v1011, %v1190
        %v1217 = vadd.f32 %v1012, %v1195
        %v1218 = vadd.f32 %v1013, %v1198
        %s1219 = scalar_lea.vmem %s1, 10
        %v1220 = vld [vmem:[%s1219] sm:$0x3]
        %vm1221 = vcmask 1045504
        %v1222 = vrot.slane %v346, 2
        %v1223 = vrot.slane %v347, 2
        %v1224 = vsel %vm1221, %v1222, %v1223
        %v1225 = vrot.slane %v348, 2
        %v1226 = vsel %vm1221, %v1223, %v1225
        %v1227 = vrot.slane %v349, 2
        %v1228 = vsel %vm1221, %v1225, %v1227
        %v1229 = vrot.slane %v350, 2
        %v1230 = vsel %vm1221, %v1227, %v1229
        %v1231 = vrot.slane %v351, 2
        %v1232 = vsel %vm1221, %v1229, %v1231
        %v1233 = vrot.slane %v352, 2
        %v1234 = vsel %vm1221, %v1231, %v1233
        %v1235 = vrot.slane %v353, 2
        %v1236 = vsel %vm1221, %v1233, %v1235
        %v1237 = vrot.slane %v876, 2
        %v1238 = vsel %vm1221, %v1235, %v1237
        %v1239 = vrot.slane %v877, 2
        %v1240 = vsel %vm1221, %v1237, %v1239
        %v1242 = vsel %vm432, %v1224, 0
        %v1245 = vsel %vm432, %v1226, 0
        %v1248 = vsel %vm432, %v1228, 0
        %v1251 = vsel %vm432, %v1230, 0
        %v1254 = vsel %vm432, %v1232, 0
        %v1257 = vsel %vm432, %v1234, 0
        %v1260 = vsel %vm432, %v1236, 0
        %v1263 = vsel %vm432, %v1238, 0
        %v1266 = vsel %vm432, %v1240, 0
        %v1269 = vsel %vm460, %v1220, 0
        %1271 = vmatprep.subr.bf16.mxu0 0
        %1272 = vmatpush1.bf16.msra.mxu0 %v1269
        %1273 = vmatprep.subr.bf16.mxu0 0
        %1274 = vmatpush1.bf16.msra.mxu0 0
        %1275 = vmatprep.subr.bf16.mxu0 0
        %1276 = vmatpush1.bf16.msra.mxu0 0
        %1277 = vmatprep.subr.bf16.mxu0 0
        %1278 = vmatpush1.bf16.msra.mxu0 0
        %1279 = vmatprep.subr.bf16.mxu0 0
        %1280 = vmatpush1.bf16.msra.mxu0 0
        %1281 = vmatprep.subr.bf16.mxu0 0
        %1282 = vmatpush1.bf16.msra.mxu0 0
        %1283 = vmatprep.subr.bf16.mxu0 0
        %1284 = vmatpush1.bf16.msra.mxu0 0
        %1285 = vmatprep.subr.bf16.mxu0 0
        %1286 = vmatpush1.bf16.msra.mxu0 0
        %1287 = vmatprep.subr.bf16.mxu0 0
        %1288 = vmatpush1.bf16.msra.mxu0 0
        %1289 = vmatprep.subr.bf16.mxu0 0
        %1290 = vmatpush1.bf16.msra.mxu0 0
        %1291 = vmatprep.subr.bf16.mxu0 0
        %1292 = vmatpush1.bf16.msra.mxu0 0
        %1293 = vmatprep.subr.bf16.mxu0 0
        %1294 = vmatpush1.bf16.msra.mxu0 0
        %1295 = vmatprep.subr.bf16.mxu0 0
        %1296 = vmatpush1.bf16.msra.mxu0 0
        %1297 = vmatprep.subr.bf16.mxu0 0
        %1298 = vmatpush1.bf16.msra.mxu0 0
        %1299 = vmatprep.subr.bf16.mxu0 0
        %1300 = vmatpush1.bf16.msra.mxu0 0
        %1301 = vmatprep.subr.bf16.mxu0 0
        %1302 = vmatpush1.bf16.msra.mxu0 0
        %1303 = vmatprep.mubr.bf16.mxu0 0
        %1304 = vmatmul.mubr.bf16.gmra.mrb[0].mxu0 %v1242
        %v1305 = vpop.f32.mrb[0].mxu0
        %v1306 = vadd.f32 0.0, %v1305
        %v1307 = vpop.f32.mrb[0].mxu0
        %v1308 = vpop.f32.mrb[0].mxu0
        %v1309 = vadd.f32 0.0, %v1308
        %v1310 = vpop.f32.mrb[0].mxu0
        %1311 = vmatprep.mubr.bf16.mxu0 0
        %1312 = vmatmul.mubr.bf16.gmra.mrb[0].mxu0 %v1245
        %v1313 = vpop.f32.mrb[0].mxu0
        %v1314 = vadd.f32 0.0, %v1313
        %v1315 = vpop.f32.mrb[0].mxu0
        %v1316 = vpop.f32.mrb[0].mxu0
        %v1317 = vadd.f32 0.0, %v1316
        %v1318 = vpop.f32.mrb[0].mxu0
        %1319 = vmatprep.mubr.bf16.mxu0 0
        %1320 = vmatmul.mubr.bf16.gmra.mrb[0].mxu0 %v1248
        %v1321 = vpop.f32.mrb[0].mxu0
        %v1322 = vadd.f32 0.0, %v1321
        %v1323 = vpop.f32.mrb[0].mxu0
        %v1324 = vpop.f32.mrb[0].mxu0
        %v1325 = vadd.f32 0.0, %v1324
        %v1326 = vpop.f32.mrb[0].mxu0
        %1327 = vmatprep.mubr.bf16.mxu0 0
        %1328 = vmatmul.mubr.bf16.gmra.mrb[0].mxu0 %v1251
        %v1329 = vpop.f32.mrb[0].mxu0
        %v1330 = vadd.f32 0.0, %v1329
        %v1331 = vpop.f32.mrb[0].mxu0
        %v1332 = vpop.f32.mrb[0].mxu0
        %v1333 = vadd.f32 0.0, %v1332
        %v1334 = vpop.f32.mrb[0].mxu0
        %1335 = vmatprep.mubr.bf16.mxu0 0
        %1336 = vmatmul.mubr.bf16.gmra.mrb[0].mxu0 %v1254
        %v1337 = vpop.f32.mrb[0].mxu0
        %v1338 = vadd.f32 0.0, %v1337
        %v1339 = vpop.f32.mrb[0].mxu0
        %v1340 = vpop.f32.mrb[0].mxu0
        %v1341 = vadd.f32 0.0, %v1340
        %v1342 = vpop.f32.mrb[0].mxu0
        %1343 = vmatprep.mubr.bf16.mxu0 0
        %1344 = vmatmul.mubr.bf16.gmra.mrb[0].mxu0 %v1257
        %v1345 = vpop.f32.mrb[0].mxu0
        %v1346 = vadd.f32 0.0, %v1345
        %v1347 = vpop.f32.mrb[0].mxu0
        %v1348 = vpop.f32.mrb[0].mxu0
        %v1349 = vadd.f32 0.0, %v1348
        %v1350 = vpop.f32.mrb[0].mxu0
        %1351 = vmatprep.mubr.bf16.mxu0 0
        %1352 = vmatmul.mubr.bf16.gmra.mrb[0].mxu0 %v1260
        %v1353 = vpop.f32.mrb[0].mxu0
        %v1354 = vadd.f32 0.0, %v1353
        %v1355 = vpop.f32.mrb[0].mxu0
        %v1356 = vpop.f32.mrb[0].mxu0
        %v1357 = vadd.f32 0.0, %v1356
        %v1358 = vpop.f32.mrb[0].mxu0
        %1359 = vmatprep.mubr.bf16.mxu0 0
        %1360 = vmatmul.mubr.bf16.gmra.mrb[0].mxu0 %v1263
        %v1361 = vpop.f32.mrb[0].mxu0
        %v1362 = vadd.f32 0.0, %v1361
        %v1363 = vpop.f32.mrb[0].mxu0
        %v1364 = vpop.f32.mrb[0].mxu0
        %v1365 = vadd.f32 0.0, %v1364
        %v1366 = vpop.f32.mrb[0].mxu0
        %1367 = vmatprep.mubr.bf16.mxu0 0
        %1368 = vmatmul.mubr.bf16.gmra.mrb[0].mxu0 %v1266
        %v1369 = vpop.f32.mrb[0].mxu0
        %v1370 = vadd.f32 0.0, %v1369
        %v1371 = vpop.f32.mrb[0].mxu0
        %v1372 = vpop.f32.mrb[0].mxu0
        %v1373 = vadd.f32 0.0, %v1372
        %v1374 = vpop.f32.mrb[0].mxu0
        %1375 = vdwg.mxu0
        %v1376 = vadd.f32 %v1201, %v1306
        %v1377 = vadd.f32 %v1202, %v1309
        %v1378 = vadd.f32 %v1203, %v1314
        %v1379 = vadd.f32 %v1204, %v1317
        %v1380 = vadd.f32 %v1205, %v1322
        %v1381 = vadd.f32 %v1206, %v1325
        %v1382 = vadd.f32 %v1207, %v1330
        %v1383 = vadd.f32 %v1208, %v1333
        %v1384 = vadd.f32 %v1209, %v1338
        %v1385 = vadd.f32 %v1210, %v1341
        %v1386 = vadd.f32 %v1211, %v1346
        %v1387 = vadd.f32 %v1212, %v1349
        %v1388 = vadd.f32 %v1213, %v1354
        %v1389 = vadd.f32 %v1214, %v1357
        %v1390 = vadd.f32 %v1215, %v1362
        %v1391 = vadd.f32 %v1216, %v1365
        %v1392 = vadd.f32 %v1217, %v1370
        %v1393 = vadd.f32 %v1218, %v1373
        %s1394 = scalar_lea.vmem %s1, 12
        %v1395 = vld [vmem:[%s1394] sm:$0x3]
        %v1398 = vunpack.c.l.b16 %v302
        %v1399 = vunpack.c.l.b16 %v303
        %v1400 = vpack.c.b16 %v1398, %v875
        %v1401 = vpack.c.b16 %v1399, %v1399
        %v1402 = vrot.slane %v1400, 2
        %v1403 = vsel %vm1221, %v1237, %v1402
        %v1404 = vrot.slane %v1401, 2
        %v1405 = vsel %vm1221, %v1402, %v1404
        %v1407 = vsel %vm432, %v1403, 0
        %v1410 = vsel %vm432, %v1405, 0
        %v1413 = vsel %vm460, %v1395, 0
        %1415 = vmatprep.subr.bf16.mxu0 0
        %1416 = vmatpush1.bf16.msra.mxu0 %v1413
        %1417 = vmatprep.subr.bf16.mxu0 0
        %1418 = vmatpush1.bf16.msra.mxu0 0
        %1419 = vmatprep.subr.bf16.mxu0 0
        %1420 = vmatpush1.bf16.msra.mxu0 0
        %1421 = vmatprep.subr.bf16.mxu0 0
        %1422 = vmatpush1.bf16.msra.mxu0 0
        %1423 = vmatprep.subr.bf16.mxu0 0
        %1424 = vmatpush1.bf16.msra.mxu0 0
        %1425 = vmatprep.subr.bf16.mxu0 0
        %1426 = vmatpush1.bf16.msra.mxu0 0
        %1427 = vmatprep.subr.bf16.mxu0 0
        %1428 = vmatpush1.bf16.msra.mxu0 0
        %1429 = vmatprep.subr.bf16.mxu0 0
        %1430 = vmatpush1.bf16.msra.mxu0 0
        %1431 = vmatprep.subr.bf16.mxu0 0
        %1432 = vmatpush1.bf16.msra.mxu0 0
        %1433 = vmatprep.subr.bf16.mxu0 0
        %1434 = vmatpush1.bf16.msra.mxu0 0
        %1435 = vmatprep.subr.bf16.mxu0 0
        %1436 = vmatpush1.bf16.msra.mxu0 0
        %1437 = vmatprep.subr.bf16.mxu0 0
        %1438 = vmatpush1.bf16.msra.mxu0 0
        %1439 = vmatprep.subr.bf16.mxu0 0
        %1440 = vmatpush1.bf16.msra.mxu0 0
        %1441 = vmatprep.subr.bf16.mxu0 0
        %1442 = vmatpush1.bf16.msra.mxu0 0
        %1443 = vmatprep.subr.bf16.mxu0 0
        %1444 = vmatpush1.bf16.msra.mxu0 0
        %1445 = vmatprep.subr.bf16.mxu0 0
        %1446 = vmatpush1.bf16.msra.mxu0 0
        %1447 = vmatprep.mubr.bf16.mxu0 0
        %1448 = vmatmul.mubr.bf16.gmra.mrb[0].mxu0 %v1245
        %v1449 = vpop.f32.mrb[0].mxu0
        %v1450 = vadd.f32 0.0, %v1449
        %v1451 = vpop.f32.mrb[0].mxu0
        %v1452 = vpop.f32.mrb[0].mxu0
        %v1453 = vadd.f32 0.0, %v1452
        %v1454 = vpop.f32.mrb[0].mxu0
        %1455 = vmatprep.mubr.bf16.mxu0 0
        %1456 = vmatmul.mubr.bf16.gmra.mrb[0].mxu0 %v1248
        %v1457 = vpop.f32.mrb[0].mxu0
        %v1458 = vadd.f32 0.0, %v1457
        %v1459 = vpop.f32.mrb[0].mxu0
        %v1460 = vpop.f32.mrb[0].mxu0
        %v1461 = vadd.f32 0.0, %v1460
        %v1462 = vpop.f32.mrb[0].mxu0
        %1463 = vmatprep.mubr.bf16.mxu0 0
        %1464 = vmatmul.mubr.bf16.gmra.mrb[0].mxu0 %v1251
        %v1465 = vpop.f32.mrb[0].mxu0
        %v1466 = vadd.f32 0.0, %v1465
        %v1467 = vpop.f32.mrb[0].mxu0
        %v1468 = vpop.f32.mrb[0].mxu0
        %v1469 = vadd.f32 0.0, %v1468
        %v1470 = vpop.f32.mrb[0].mxu0
        %1471 = vmatprep.mubr.bf16.mxu0 0
        %1472 = vmatmul.mubr.bf16.gmra.mrb[0].mxu0 %v1254
        %v1473 = vpop.f32.mrb[0].mxu0
        %v1474 = vadd.f32 0.0, %v1473
        %v1475 = vpop.f32.mrb[0].mxu0
        %v1476 = vpop.f32.mrb[0].mxu0
        %v1477 = vadd.f32 0.0, %v1476
        %v1478 = vpop.f32.mrb[0].mxu0
        %1479 = vmatprep.mubr.bf16.mxu0 0
        %1480 = vmatmul.mubr.bf16.gmra.mrb[0].mxu0 %v1257
        %v1481 = vpop.f32.mrb[0].mxu0
        %v1482 = vadd.f32 0.0, %v1481
        %v1483 = vpop.f32.mrb[0].mxu0
        %v1484 = vpop.f32.mrb[0].mxu0
        %v1485 = vadd.f32 0.0, %v1484
        %v1486 = vpop.f32.mrb[0].mxu0
        %1487 = vmatprep.mubr.bf16.mxu0 0
        %1488 = vmatmul.mubr.bf16.gmra.mrb[0].mxu0 %v1260
        %v1489 = vpop.f32.mrb[0].mxu0
        %v1490 = vadd.f32 0.0, %v1489
        %v1491 = vpop.f32.mrb[0].mxu0
        %v1492 = vpop.f32.mrb[0].mxu0
        %v1493 = vadd.f32 0.0, %v1492
        %v1494 = vpop.f32.mrb[0].mxu0
        %1495 = vmatprep.mubr.bf16.mxu0 0
        %1496 = vmatmul.mubr.bf16.gmra.mrb[0].mxu0 %v1263
        %v1497 = vpop.f32.mrb[0].mxu0
        %v1498 = vadd.f32 0.0, %v1497
        %v1499 = vpop.f32.mrb[0].mxu0
        %v1500 = vpop.f32.mrb[0].mxu0
        %v1501 = vadd.f32 0.0, %v1500
        %v1502 = vpop.f32.mrb[0].mxu0
        %1503 = vmatprep.mubr.bf16.mxu0 0
        %1504 = vmatmul.mubr.bf16.gmra.mrb[0].mxu0 %v1407
        %v1505 = vpop.f32.mrb[0].mxu0
        %v1506 = vadd.f32 0.0, %v1505
        %v1507 = vpop.f32.mrb[0].mxu0
        %v1508 = vpop.f32.mrb[0].mxu0
        %v1509 = vadd.f32 0.0, %v1508
        %v1510 = vpop.f32.mrb[0].mxu0
        %1511 = vmatprep.mubr.bf16.mxu0 0
        %1512 = vmatmul.mubr.bf16.gmra.mrb[0].mxu0 %v1410
        %v1513 = vpop.f32.mrb[0].mxu0
        %v1514 = vadd.f32 0.0, %v1513
        %v1515 = vpop.f32.mrb[0].mxu0
        %v1516 = vpop.f32.mrb[0].mxu0
        %v1517 = vadd.f32 0.0, %v1516
        %v1518 = vpop.f32.mrb[0].mxu0
        %1519 = vdwg.mxu0
        %v1520 = vadd.f32 %v1376, %v1450
        %v1521 = vadd.f32 %v1377, %v1453
        %v1522 = vadd.f32 %v1378, %v1458
        %v1523 = vadd.f32 %v1379, %v1461
        %v1524 = vadd.f32 %v1380, %v1466
        %v1525 = vadd.f32 %v1381, %v1469
        %v1526 = vadd.f32 %v1382, %v1474
        %v1527 = vadd.f32 %v1383, %v1477
        %v1528 = vadd.f32 %v1384, %v1482
        %v1529 = vadd.f32 %v1385, %v1485
        %v1530 = vadd.f32 %v1386, %v1490
        %v1531 = vadd.f32 %v1387, %v1493
        %v1532 = vadd.f32 %v1388, %v1498
        %v1533 = vadd.f32 %v1389, %v1501
        %v1534 = vadd.f32 %v1390, %v1506
        %v1535 = vadd.f32 %v1391, %v1509
        %v1536 = vadd.f32 %v1392, %v1514
        %v1537 = vadd.f32 %v1393, %v1517
        %s1538 = scalar_lea.vmem %s1, 14
        %v1539 = vld [vmem:[%s1538] sm:$0x3]
        %vm1540 = vsmask.f32 5376
        %v1541 = vrot.slane %v376, 2
        %v1542 = vrot.slane %v372, 3
        %v1543 = vor.u32 %v1541, %v1542
        %v1544 = vrot.slane %v384, 2
        %v1545 = vrot.slane %v380, 3
        %v1546 = vor.u32 %v1544, %v1545
        %v1547 = vsel %vm1540, %v1543, %v1546
        %v1548 = vrot.slane %v392, 2
        %v1549 = vrot.slane %v388, 3
        %v1550 = vor.u32 %v1548, %v1549
        %v1551 = vsel %vm1540, %v1546, %v1550
        %v1552 = vrot.slane %v400, 2
        %v1553 = vrot.slane %v396, 3
        %v1554 = vor.u32 %v1552, %v1553
        %v1555 = vsel %vm1540, %v1550, %v1554
        %v1556 = vrot.slane %v408, 2
        %v1557 = vrot.slane %v404, 3
        %v1558 = vor.u32 %v1556, %v1557
        %v1559 = vsel %vm1540, %v1554, %v1558
        %v1560 = vrot.slane %v416, 2
        %v1561 = vrot.slane %v412, 3
        %v1562 = vor.u32 %v1560, %v1561
        %v1563 = vsel %vm1540, %v1558, %v1562
        %v1564 = vrot.slane %v424, 2
        %v1565 = vrot.slane %v420, 3
        %v1566 = vor.u32 %v1564, %v1565
        %v1567 = vsel %vm1540, %v1562, %v1566
        %v1568 = vrot.slane %v1049, 2
        %v1569 = vrot.slane %v1052, 3
        %v1570 = vor.u32 %v1568, %v1569
        %v1571 = vsel %vm1540, %v1566, %v1570
        %v1573 = vshrl.u32 %v1400, 16
        %v1575 = vrot.slane %v1573, 2
        %v1576 = vshll.u32 %v1400, 16
        %v1578 = vrot.slane %v1576, 3
        %v1579 = vor.u32 %v1575, %v1578
        %v1580 = vsel %vm1540, %v1570, %v1579
        %v1582 = vshrl.u32 %v1401, 16
        %v1584 = vrot.slane %v1582, 2
        %v1585 = vshll.u32 %v1401, 16
        %v1587 = vrot.slane %v1585, 3
        %v1588 = vor.u32 %v1584, %v1587
        %v1589 = vsel %vm1540, %v1579, %v1588
        %v1591 = vsel %vm432, %v1547, 0
        %v1594 = vsel %vm432, %v1551, 0
        %v1597 = vsel %vm432, %v1555, 0
        %v1600 = vsel %vm432, %v1559, 0
        %v1603 = vsel %vm432, %v1563, 0
        %v1606 = vsel %vm432, %v1567, 0
        %v1609 = vsel %vm432, %v1571, 0
        %v1612 = vsel %vm432, %v1580, 0
        %v1615 = vsel %vm432, %v1589, 0
        %v1618 = vsel %vm460, %v1539, 0
        %1620 = vmatprep.subr.bf16.mxu0 0
        %1621 = vmatpush1.bf16.msra.mxu0 %v1618
        %1622 = vmatprep.subr.bf16.mxu0 0
        %1623 = vmatpush1.bf16.msra.mxu0 0
        %1624 = vmatprep.subr.bf16.mxu0 0
        %1625 = vmatpush1.bf16.msra.mxu0 0
        %1626 = vmatprep.subr.bf16.mxu0 0
        %1627 = vmatpush1.bf16.msra.mxu0 0
        %1628 = vmatprep.subr.bf16.mxu0 0
        %1629 = vmatpush1.bf16.msra.mxu0 0
        %1630 = vmatprep.subr.bf16.mxu0 0
        %1631 = vmatpush1.bf16.msra.mxu0 0
        %1632 = vmatprep.subr.bf16.mxu0 0
        %1633 = vmatpush1.bf16.msra.mxu0 0
        %1634 = vmatprep.subr.bf16.mxu0 0
        %1635 = vmatpush1.bf16.msra.mxu0 0
        %1636 = vmatprep.subr.bf16.mxu0 0
        %1637 = vmatpush1.bf16.msra.mxu0 0
        %1638 = vmatprep.subr.bf16.mxu0 0
        %1639 = vmatpush1.bf16.msra.mxu0 0
        %1640 = vmatprep.subr.bf16.mxu0 0
        %1641 = vmatpush1.bf16.msra.mxu0 0
        %1642 = vmatprep.subr.bf16.mxu0 0
        %1643 = vmatpush1.bf16.msra.mxu0 0
        %1644 = vmatprep.subr.bf16.mxu0 0
        %1645 = vmatpush1.bf16.msra.mxu0 0
        %1646 = vmatprep.subr.bf16.mxu0 0
        %1647 = vmatpush1.bf16.msra.mxu0 0
        %1648 = vmatprep.subr.bf16.mxu0 0
        %1649 = vmatpush1.bf16.msra.mxu0 0
        %1650 = vmatprep.subr.bf16.mxu0 0
        %1651 = vmatpush1.bf16.msra.mxu0 0
        %1652 = vmatprep.mubr.bf16.mxu0 0
        %1653 = vmatmul.mubr.bf16.gmra.mrb[0].mxu0 %v1591
        %v1654 = vpop.f32.mrb[0].mxu0
        %v1655 = vadd.f32 0.0, %v1654
        %v1656 = vpop.f32.mrb[0].mxu0
        %v1657 = vpop.f32.mrb[0].mxu0
        %v1658 = vadd.f32 0.0, %v1657
        %v1659 = vpop.f32.mrb[0].mxu0
        %1660 = vmatprep.mubr.bf16.mxu0 0
        %1661 = vmatmul.mubr.bf16.gmra.mrb[0].mxu0 %v1594
        %v1662 = vpop.f32.mrb[0].mxu0
        %v1663 = vadd.f32 0.0, %v1662
        %v1664 = vpop.f32.mrb[0].mxu0
        %v1665 = vpop.f32.mrb[0].mxu0
        %v1666 = vadd.f32 0.0, %v1665
        %v1667 = vpop.f32.mrb[0].mxu0
        %1668 = vmatprep.mubr.bf16.mxu0 0
        %1669 = vmatmul.mubr.bf16.gmra.mrb[0].mxu0 %v1597
        %v1670 = vpop.f32.mrb[0].mxu0
        %v1671 = vadd.f32 0.0, %v1670
        %v1672 = vpop.f32.mrb[0].mxu0
        %v1673 = vpop.f32.mrb[0].mxu0
        %v1674 = vadd.f32 0.0, %v1673
        %v1675 = vpop.f32.mrb[0].mxu0
        %1676 = vmatprep.mubr.bf16.mxu0 0
        %1677 = vmatmul.mubr.bf16.gmra.mrb[0].mxu0 %v1600
        %v1678 = vpop.f32.mrb[0].mxu0
        %v1679 = vadd.f32 0.0, %v1678
        %v1680 = vpop.f32.mrb[0].mxu0
        %v1681 = vpop.f32.mrb[0].mxu0
        %v1682 = vadd.f32 0.0, %v1681
        %v1683 = vpop.f32.mrb[0].mxu0
        %1684 = vmatprep.mubr.bf16.mxu0 0
        %1685 = vmatmul.mubr.bf16.gmra.mrb[0].mxu0 %v1603
        %v1686 = vpop.f32.mrb[0].mxu0
        %v1687 = vadd.f32 0.0, %v1686
        %v1688 = vpop.f32.mrb[0].mxu0
        %v1689 = vpop.f32.mrb[0].mxu0
        %v1690 = vadd.f32 0.0, %v1689
        %v1691 = vpop.f32.mrb[0].mxu0
        %1692 = vmatprep.mubr.bf16.mxu0 0
        %1693 = vmatmul.mubr.bf16.gmra.mrb[0].mxu0 %v1606
        %v1694 = vpop.f32.mrb[0].mxu0
        %v1695 = vadd.f32 0.0, %v1694
        %v1696 = vpop.f32.mrb[0].mxu0
        %v1697 = vpop.f32.mrb[0].mxu0
        %v1698 = vadd.f32 0.0, %v1697
        %v1699 = vpop.f32.mrb[0].mxu0
        %1700 = vmatprep.mubr.bf16.mxu0 0
        %1701 = vmatmul.mubr.bf16.gmra.mrb[0].mxu0 %v1609
        %v1702 = vpop.f32.mrb[0].mxu0
        %v1703 = vadd.f32 0.0, %v1702
        %v1704 = vpop.f32.mrb[0].mxu0
        %v1705 = vpop.f32.mrb[0].mxu0
        %v1706 = vadd.f32 0.0, %v1705
        %v1707 = vpop.f32.mrb[0].mxu0
        %1708 = vmatprep.mubr.bf16.mxu0 0
        %1709 = vmatmul.mubr.bf16.gmra.mrb[0].mxu0 %v1612
        %v1710 = vpop.f32.mrb[0].mxu0
        %v1711 = vadd.f32 0.0, %v1710
        %v1712 = vpop.f32.mrb[0].mxu0
        %v1713 = vpop.f32.mrb[0].mxu0
        %v1714 = vadd.f32 0.0, %v1713
        %v1715 = vpop.f32.mrb[0].mxu0
        %1716 = vmatprep.mubr.bf16.mxu0 0
        %1717 = vmatmul.mubr.bf16.gmra.mrb[0].mxu0 %v1615
        %v1718 = vpop.f32.mrb[0].mxu0
        %v1719 = vadd.f32 0.0, %v1718
        %v1720 = vpop.f32.mrb[0].mxu0
        %v1721 = vpop.f32.mrb[0].mxu0
        %v1722 = vadd.f32 0.0, %v1721
        %v1723 = vpop.f32.mrb[0].mxu0
        %1724 = vdwg.mxu0
        %v1725 = vadd.f32 %v1520, %v1655
        %v1726 = vadd.f32 %v1521, %v1658
        %v1727 = vadd.f32 %v1522, %v1663
        %v1728 = vadd.f32 %v1523, %v1666
        %v1729 = vadd.f32 %v1524, %v1671
        %v1730 = vadd.f32 %v1525, %v1674
        %v1731 = vadd.f32 %v1526, %v1679
        %v1732 = vadd.f32 %v1527, %v1682
        %v1733 = vadd.f32 %v1528, %v1687
        %v1734 = vadd.f32 %v1529, %v1690
        %v1735 = vadd.f32 %v1530, %v1695
        %v1736 = vadd.f32 %v1531, %v1698
        %v1737 = vadd.f32 %v1532, %v1703
        %v1738 = vadd.f32 %v1533, %v1706
        %v1739 = vadd.f32 %v1534, %v1711
        %v1740 = vadd.f32 %v1535, %v1714
        %v1741 = vadd.f32 %v1536, %v1719
        %v1742 = vadd.f32 %v1537, %v1722
        %s1743 = scalar_lea.vmem %s1, 16
        %v1744 = vld [vmem:[%s1743] sm:$0x3]
        %vm1745 = vcmask 1044480
        %v1746 = vrot.slane %v347, 3
        %v1747 = vrot.slane %v348, 3
        %v1748 = vsel %vm1745, %v1746, %v1747
        %v1749 = vrot.slane %v349, 3
        %v1750 = vsel %vm1745, %v1747, %v1749
        %v1751 = vrot.slane %v350, 3
        %v1752 = vsel %vm1745, %v1749, %v1751
        %v1753 = vrot.slane %v351, 3
        %v1754 = vsel %vm1745, %v1751, %v1753
        %v1755 = vrot.slane %v352, 3
        %v1756 = vsel %vm1745, %v1753, %v1755
        %v1757 = vrot.slane %v353, 3
        %v1758 = vsel %vm1745, %v1755, %v1757
        %v1759 = vrot.slane %v876, 3
        %v1760 = vsel %vm1745, %v1757, %v1759
        %v1761 = vrot.slane %v1400, 3
        %v1762 = vsel %vm1745, %v1759, %v1761
        %v1763 = vrot.slane %v1401, 3
        %v1764 = vsel %vm1745, %v1761, %v1763
        %v1766 = vsel %vm432, %v1748, 0
        %v1769 = vsel %vm432, %v1750, 0
        %v1772 = vsel %vm432, %v1752, 0
        %v1775 = vsel %vm432, %v1754, 0
        %v1778 = vsel %vm432, %v1756, 0
        %v1781 = vsel %vm432, %v1758, 0
        %v1784 = vsel %vm432, %v1760, 0
        %v1787 = vsel %vm432, %v1762, 0
        %v1790 = vsel %vm432, %v1764, 0
        %v1793 = vsel %vm460, %v1744, 0
        %1795 = vmatprep.subr.bf16.mxu0 0
        %1796 = vmatpush1.bf16.msra.mxu0 %v1793
        %1797 = vmatprep.subr.bf16.mxu0 0
        %1798 = vmatpush1.bf16.msra.mxu0 0
        %1799 = vmatprep.subr.bf16.mxu0 0
        %1800 = vmatpush1.bf16.msra.mxu0 0
        %1801 = vmatprep.subr.bf16.mxu0 0
        %1802 = vmatpush1.bf16.msra.mxu0 0
        %1803 = vmatprep.subr.bf16.mxu0 0
        %1804 = vmatpush1.bf16.msra.mxu0 0
        %1805 = vmatprep.subr.bf16.mxu0 0
        %1806 = vmatpush1.bf16.msra.mxu0 0
        %1807 = vmatprep.subr.bf16.mxu0 0
        %1808 = vmatpush1.bf16.msra.mxu0 0
        %1809 = vmatprep.subr.bf16.mxu0 0
        %1810 = vmatpush1.bf16.msra.mxu0 0
        %1811 = vmatprep.subr.bf16.mxu0 0
        %1812 = vmatpush1.bf16.msra.mxu0 0
        %1813 = vmatprep.subr.bf16.mxu0 0
        %1814 = vmatpush1.bf16.msra.mxu0 0
        %1815 = vmatprep.subr.bf16.mxu0 0
        %1816 = vmatpush1.bf16.msra.mxu0 0
        %1817 = vmatprep.subr.bf16.mxu0 0
        %1818 = vmatpush1.bf16.msra.mxu0 0
        %1819 = vmatprep.subr.bf16.mxu0 0
        %1820 = vmatpush1.bf16.msra.mxu0 0
        %1821 = vmatprep.subr.bf16.mxu0 0
        %1822 = vmatpush1.bf16.msra.mxu0 0
        %1823 = vmatprep.subr.bf16.mxu0 0
        %1824 = vmatpush1.bf16.msra.mxu0 0
        %1825 = vmatprep.subr.bf16.mxu0 0
        %1826 = vmatpush1.bf16.msra.mxu0 0
        %1827 = vmatprep.mubr.bf16.mxu0 0
        %1828 = vmatmul.mubr.bf16.gmra.mrb[0].mxu0 %v1766
        %v1829 = vpop.f32.mrb[0].mxu0
        %v1830 = vadd.f32 0.0, %v1829
        %v1831 = vpop.f32.mrb[0].mxu0
        %v1832 = vpop.f32.mrb[0].mxu0
        %v1833 = vadd.f32 0.0, %v1832
        %v1834 = vpop.f32.mrb[0].mxu0
        %1835 = vmatprep.mubr.bf16.mxu0 0
        %1836 = vmatmul.mubr.bf16.gmra.mrb[0].mxu0 %v1769
        %v1837 = vpop.f32.mrb[0].mxu0
        %v1838 = vadd.f32 0.0, %v1837
        %v1839 = vpop.f32.mrb[0].mxu0
        %v1840 = vpop.f32.mrb[0].mxu0
        %v1841 = vadd.f32 0.0, %v1840
        %v1842 = vpop.f32.mrb[0].mxu0
        %1843 = vmatprep.mubr.bf16.mxu0 0
        %1844 = vmatmul.mubr.bf16.gmra.mrb[0].mxu0 %v1772
        %v1845 = vpop.f32.mrb[0].mxu0
        %v1846 = vadd.f32 0.0, %v1845
        %v1847 = vpop.f32.mrb[0].mxu0
        %v1848 = vpop.f32.mrb[0].mxu0
        %v1849 = vadd.f32 0.0, %v1848
        %v1850 = vpop.f32.mrb[0].mxu0
        %1851 = vmatprep.mubr.bf16.mxu0 0
        %1852 = vmatmul.mubr.bf16.gmra.mrb[0].mxu0 %v1775
        %v1853 = vpop.f32.mrb[0].mxu0
        %v1854 = vadd.f32 0.0, %v1853
        %v1855 = vpop.f32.mrb[0].mxu0
        %v1856 = vpop.f32.mrb[0].mxu0
        %v1857 = vadd.f32 0.0, %v1856
        %v1858 = vpop.f32.mrb[0].mxu0
        %1859 = vmatprep.mubr.bf16.mxu0 0
        %1860 = vmatmul.mubr.bf16.gmra.mrb[0].mxu0 %v1778
        %v1861 = vpop.f32.mrb[0].mxu0
        %v1862 = vadd.f32 0.0, %v1861
        %v1863 = vpop.f32.mrb[0].mxu0
        %v1864 = vpop.f32.mrb[0].mxu0
        %v1865 = vadd.f32 0.0, %v1864
        %v1866 = vpop.f32.mrb[0].mxu0
        %1867 = vmatprep.mubr.bf16.mxu0 0
        %1868 = vmatmul.mubr.bf16.gmra.mrb[0].mxu0 %v1781
        %v1869 = vpop.f32.mrb[0].mxu0
        %v1870 = vadd.f32 0.0, %v1869
        %v1871 = vpop.f32.mrb[0].mxu0
        %v1872 = vpop.f32.mrb[0].mxu0
        %v1873 = vadd.f32 0.0, %v1872
        %v1874 = vpop.f32.mrb[0].mxu0
        %1875 = vmatprep.mubr.bf16.mxu0 0
        %1876 = vmatmul.mubr.bf16.gmra.mrb[0].mxu0 %v1784
        %v1877 = vpop.f32.mrb[0].mxu0
        %v1878 = vadd.f32 0.0, %v1877
        %v1879 = vpop.f32.mrb[0].mxu0
        %v1880 = vpop.f32.mrb[0].mxu0
        %v1881 = vadd.f32 0.0, %v1880
        %v1882 = vpop.f32.mrb[0].mxu0
        %1883 = vmatprep.mubr.bf16.mxu0 0
        %1884 = vmatmul.mubr.bf16.gmra.mrb[0].mxu0 %v1787
        %v1885 = vpop.f32.mrb[0].mxu0
        %v1886 = vadd.f32 0.0, %v1885
        %v1887 = vpop.f32.mrb[0].mxu0
        %v1888 = vpop.f32.mrb[0].mxu0
        %v1889 = vadd.f32 0.0, %v1888
        %v1890 = vpop.f32.mrb[0].mxu0
        %1891 = vmatprep.mubr.bf16.mxu0 0
        %1892 = vmatmul.mubr.bf16.gmra.mrb[0].mxu0 %v1790
        %v1893 = vpop.f32.mrb[0].mxu0
        %v1894 = vadd.f32 0.0, %v1893
        %v1895 = vpop.f32.mrb[0].mxu0
        %v1896 = vpop.f32.mrb[0].mxu0
        %v1897 = vadd.f32 0.0, %v1896
        %v1898 = vpop.f32.mrb[0].mxu0
        %1899 = vdwg.mxu0
        %v1900 = vadd.f32 %v1725, %v1830
        %v1901 = vadd.f32 %v1726, %v1833
        %v1902 = vadd.f32 %v1727, %v1838
        %v1903 = vadd.f32 %v1728, %v1841
        %v1904 = vadd.f32 %v1729, %v1846
        %v1905 = vadd.f32 %v1730, %v1849
        %v1906 = vadd.f32 %v1731, %v1854
        %v1907 = vadd.f32 %v1732, %v1857
        %v1908 = vadd.f32 %v1733, %v1862
        %v1909 = vadd.f32 %v1734, %v1865
        %v1910 = vadd.f32 %v1735, %v1870
        %v1911 = vadd.f32 %v1736, %v1873
        %v1912 = vadd.f32 %v1737, %v1878
        %v1913 = vadd.f32 %v1738, %v1881
        %v1914 = vadd.f32 %v1739, %v1886
        %v1915 = vadd.f32 %v1740, %v1889
        %v1916 = vadd.f32 %v1741, %v1894
        %v1917 = vadd.f32 %v1742, %v1897
        %v1918 = vld [vmem:[%s2] sm:$0x1]
        %v1920 = vlaneseq
        %v1921 = vshrl.u32 %v1920, 7
        %v1922 = vsub.s32 0, %v1921
        %v1923 = vrot.slane %v1918, %v1922
        %v1925 = vadd.f32 %v1900, %v1923
        %v1926 = vadd.f32 %v1901, %v1923
        %v1927 = vadd.f32 %v1902, %v1923
        %v1928 = vadd.f32 %v1903, %v1923
        %v1929 = vadd.f32 %v1904, %v1923
        %v1930 = vadd.f32 %v1905, %v1923
        %v1931 = vadd.f32 %v1906, %v1923
        %v1932 = vadd.f32 %v1907, %v1923
        %v1933 = vadd.f32 %v1908, %v1923
        %v1934 = vadd.f32 %v1909, %v1923
        %v1935 = vadd.f32 %v1910, %v1923
        %v1936 = vadd.f32 %v1911, %v1923
        %v1937 = vadd.f32 %v1912, %v1923
        %v1938 = vadd.f32 %v1913, %v1923
        %v1939 = vadd.f32 %v1914, %v1923
        %v1940 = vadd.f32 %v1915, %v1923
        %v1941 = vadd.f32 %v1916, %v1923
        %v1942 = vadd.f32 %v1917, %v1923
        %v1943 = vmax.f32 %v1925, 0.0
        %v1944 = vmax.f32 %v1926, 0.0
        %v1945 = vmax.f32 %v1927, 0.0
        %v1946 = vmax.f32 %v1928, 0.0
        %v1947 = vmax.f32 %v1929, 0.0
        %v1948 = vmax.f32 %v1930, 0.0
        %v1949 = vmax.f32 %v1931, 0.0
        %v1950 = vmax.f32 %v1932, 0.0
        %v1951 = vmax.f32 %v1933, 0.0
        %v1952 = vmax.f32 %v1934, 0.0
        %v1953 = vmax.f32 %v1935, 0.0
        %v1954 = vmax.f32 %v1936, 0.0
        %v1955 = vmax.f32 %v1937, 0.0
        %v1956 = vmax.f32 %v1938, 0.0
        %v1957 = vmax.f32 %v1939, 0.0
        %v1958 = vmax.f32 %v1940, 0.0
        %v1959 = vmax.f32 %v1941, 0.0
        %v1960 = vmax.f32 %v1942, 0.0
        %v1961 = vld [vmem:[%s3] sm:$0xff]
        %v1962 = vld [vmem:[%s3 + $0x8] sm:$0xff]
        %v1963 = vld [vmem:[%s3 + $0x10] sm:$0xff]
        %v1964 = vld [vmem:[%s3 + $0x18] sm:$0xff]
        %v1965 = vld [vmem:[%s3 + $0x20] sm:$0xff]
        %v1966 = vld [vmem:[%s3 + $0x28] sm:$0xff]
        %v1967 = vld [vmem:[%s3 + $0x30] sm:$0xff]
        %v1968 = vld [vmem:[%s3 + $0x38] sm:$0xff]
        %v1969 = vld [vmem:[%s3 + $0x40] sm:$0xff]
        %v1970 = vld [vmem:[%s3 + $0x48] sm:$0xff]
        %v1971 = vld [vmem:[%s3 + $0x50] sm:$0xff]
        %v1972 = vld [vmem:[%s3 + $0x58] sm:$0xff]
        %v1973 = vld [vmem:[%s3 + $0x60] sm:$0xff]
        %v1974 = vld [vmem:[%s3 + $0x68] sm:$0xff]
        %v1975 = vld [vmem:[%s3 + $0x70] sm:$0xff]
        %v1976 = vld [vmem:[%s3 + $0x78] sm:$0xff]
        %v1977 = vld [vmem:[%s3 + $0x80] sm:$0xff]
        %v1978 = vld [vmem:[%s3 + $0x88] sm:$0xff]
        %1980 = vset.pattern.permute.xlu0 0
        %1981 = vperm.xlu0 %1980, %v1961
        %v1982 = vpop.permute.xlu0 %1981
        %1985 = vset.pattern.permute.xlu0 0
        %1986 = vperm.xlu0 %1985, %v1962
        %v1987 = vpop.permute.xlu0 %1986
        %1990 = vset.pattern.permute.xlu0 0
        %1991 = vperm.xlu0 %1990, %v1963
        %v1992 = vpop.permute.xlu0 %1991
        %1995 = vset.pattern.permute.xlu0 0
        %1996 = vperm.xlu0 %1995, %v1964
        %v1997 = vpop.permute.xlu0 %1996
        %2000 = vset.pattern.permute.xlu0 0
        %2001 = vperm.xlu0 %2000, %v1965
        %v2002 = vpop.permute.xlu0 %2001
        %2005 = vset.pattern.permute.xlu0 0
        %2006 = vperm.xlu0 %2005, %v1966
        %v2007 = vpop.permute.xlu0 %2006
        %2010 = vset.pattern.permute.xlu0 0
        %2011 = vperm.xlu0 %2010, %v1967
        %v2012 = vpop.permute.xlu0 %2011
        %2015 = vset.pattern.permute.xlu0 0
        %2016 = vperm.xlu0 %2015, %v1968
        %v2017 = vpop.permute.xlu0 %2016
        %2020 = vset.pattern.permute.xlu0 0
        %2021 = vperm.xlu0 %2020, %v1969
        %v2022 = vpop.permute.xlu0 %2021
        %2025 = vset.pattern.permute.xlu0 0
        %2026 = vperm.xlu0 %2025, %v1970
        %v2027 = vpop.permute.xlu0 %2026
        %2030 = vset.pattern.permute.xlu0 0
        %2031 = vperm.xlu0 %2030, %v1971
        %v2032 = vpop.permute.xlu0 %2031
        %2035 = vset.pattern.permute.xlu0 0
        %2036 = vperm.xlu0 %2035, %v1972
        %v2037 = vpop.permute.xlu0 %2036
        %2040 = vset.pattern.permute.xlu0 0
        %2041 = vperm.xlu0 %2040, %v1973
        %v2042 = vpop.permute.xlu0 %2041
        %2045 = vset.pattern.permute.xlu0 0
        %2046 = vperm.xlu0 %2045, %v1974
        %v2047 = vpop.permute.xlu0 %2046
        %2050 = vset.pattern.permute.xlu0 0
        %2051 = vperm.xlu0 %2050, %v1975
        %v2052 = vpop.permute.xlu0 %2051
        %2055 = vset.pattern.permute.xlu0 0
        %2056 = vperm.xlu0 %2055, %v1976
        %v2057 = vpop.permute.xlu0 %2056
        %2060 = vset.pattern.permute.xlu0 0
        %2061 = vperm.xlu0 %2060, %v1977
        %v2062 = vpop.permute.xlu0 %2061
        %2065 = vset.pattern.permute.xlu0 0
        %2066 = vperm.xlu0 %2065, %v1978
        %v2067 = vpop.permute.xlu0 %2066
        %v2069 = vmul.f32 %v1943, %v1982
        %v2070 = vmul.f32 %v1944, %v1987
        %v2071 = vmul.f32 %v1945, %v1992
        %v2072 = vmul.f32 %v1946, %v1997
        %v2073 = vmul.f32 %v1947, %v2002
        %v2074 = vmul.f32 %v1948, %v2007
        %v2075 = vmul.f32 %v1949, %v2012
        %v2076 = vmul.f32 %v1950, %v2017
        %v2077 = vmul.f32 %v1951, %v2022
        %v2078 = vmul.f32 %v1952, %v2027
        %v2079 = vmul.f32 %v1953, %v2032
        %v2080 = vmul.f32 %v1954, %v2037
        %v2081 = vmul.f32 %v1955, %v2042
        %v2082 = vmul.f32 %v1956, %v2047
        %v2083 = vmul.f32 %v1957, %v2052
        %v2084 = vmul.f32 %v1958, %v2057
        %v2085 = vmul.f32 %v1959, %v2062
        %v2086 = vmul.f32 %v1960, %v2067
        %v2087 = vld [vmem:[#allocation2] sm:$0x1]
        %v2088 = vadd.f32 %v2069, %v2070
        %v2089 = vadd.f32 %v2088, %v2071
        %v2090 = vadd.f32 %v2089, %v2072
        %v2091 = vadd.f32 %v2090, %v2073
        %v2092 = vadd.f32 %v2091, %v2074
        %v2093 = vadd.f32 %v2092, %v2075
        %v2094 = vadd.f32 %v2093, %v2076
        %v2095 = vadd.f32 %v2094, %v2077
        %v2096 = vadd.f32 %v2095, %v2078
        %v2097 = vadd.f32 %v2096, %v2079
        %v2098 = vadd.f32 %v2097, %v2080
        %v2099 = vadd.f32 %v2098, %v2081
        %v2100 = vadd.f32 %v2099, %v2082
        %v2101 = vadd.f32 %v2100, %v2083
        %v2102 = vadd.f32 %v2101, %v2084
        %v2103 = vadd.f32 %v2102, %v2085
        %v2104 = vadd.f32 %v2103, %v2086
        %v2105 = vrot.slane %v2104, 4
        %v2106 = vadd.f32 %v2104, %v2105
        %v2107 = vrot.slane %v2106, 2
        %v2108 = vadd.f32 %v2106, %v2107
        %v2109 = vrot.slane %v2108, 1
        %v2110 = vadd.f32 %v2108, %v2109
        %v2111 = vadd.f32 %v2087, %v2110
        %2112 = vst [vmem:[#allocation2] sm:$0x1] %v2111
        %p2113 = scmp.eq.s32.totalorder %s25, 1
        // Predicated region
        $region49: #{tpu_custom_call.1} parent=43 // pred_check
          %p2114 = pneg %p2113
        $region50: #{tpu_custom_call.1} parent=43 // pred_check_branch
          %2116 = sbr.rel (%p2114) target = $region52
        $region51: #{tpu_custom_call.1} parent=43 // pred_region
          %v2117 = vld [vmem:[#allocation2] sm:$0x1]
          %v2118 = vmul.f32 %v2117, 0.00390625
          %v2119 = vpack.c.bf16 %v2118, %v2118
          %v2120 = vld [vmem:[%s4] sm:$0xf]
          %v2121 = vld [vmem:[%s4 + $0x4] sm:$0xf]
          %v2122 = vld [vmem:[%s4 + $0x8] sm:$0xf]
          %v2123 = vld [vmem:[%s4 + $0xc] sm:$0xf]
          %v2124 = vld [vmem:[%s4 + $0x10] sm:$0xf]
          %v2125 = vld [vmem:[%s4 + $0x14] sm:$0xf]
          %v2126 = vld [vmem:[%s4 + $0x18] sm:$0xf]
          %v2127 = vld [vmem:[%s4 + $0x1c] sm:$0xf]
          %v2128 = vld [vmem:[%s4 + $0x20] sm:$0xf]
          %v2129 = vld [vmem:[%s4 + $0x24] sm:$0xf]
          %v2130 = vld [vmem:[%s4 + $0x28] sm:$0xf]
          %v2131 = vld [vmem:[%s4 + $0x2c] sm:$0xf]
          %v2132 = vld [vmem:[%s4 + $0x30] sm:$0xf]
          %v2133 = vld [vmem:[%s4 + $0x34] sm:$0xf]
          %v2134 = vld [vmem:[%s4 + $0x38] sm:$0xf]
          %v2135 = vld [vmem:[%s4 + $0x3c] sm:$0xf]
          %v2136 = vld [vmem:[%s5] sm:$0x1]
          %v2153 = vunpack.c.l.b16 %v2120
          %v2154 = vunpack.c.l.b16 %v2121
          %v2155 = vunpack.c.l.b16 %v2122
          %v2156 = vunpack.c.l.b16 %v2123
          %v2157 = vunpack.c.l.b16 %v2124
          %v2158 = vunpack.c.l.b16 %v2125
          %v2159 = vunpack.c.l.b16 %v2126
          %v2160 = vunpack.c.l.b16 %v2127
          %v2161 = vunpack.c.l.b16 %v2128
          %v2162 = vunpack.c.l.b16 %v2129
          %v2163 = vunpack.c.l.b16 %v2130
          %v2164 = vunpack.c.l.b16 %v2131
          %v2165 = vunpack.c.l.b16 %v2132
          %v2166 = vunpack.c.l.b16 %v2133
          %v2167 = vunpack.c.l.b16 %v2134
          %v2168 = vunpack.c.l.b16 %v2135
          %v2169 = vpack.c.b16 %v2154, %v2153
          %v2170 = vpack.c.b16 %v2156, %v2155
          %v2171 = vpack.c.b16 %v2158, %v2157
          %v2172 = vpack.c.b16 %v2160, %v2159
          %v2173 = vpack.c.b16 %v2162, %v2161
          %v2174 = vpack.c.b16 %v2164, %v2163
          %v2175 = vpack.c.b16 %v2166, %v2165
          %v2176 = vpack.c.b16 %v2168, %v2167
          %2185 = vmatprep.subr.bf16.mxu0 0
          %2186 = vmatpush1.bf16.msra.mxu0 %v2169
          %2187 = vmatprep.subr.bf16.mxu0 0
          %2188 = vmatpush1.bf16.msra.mxu0 %v2170
          %2189 = vmatprep.subr.bf16.mxu0 0
          %2190 = vmatpush1.bf16.msra.mxu0 %v2171
          %2191 = vmatprep.subr.bf16.mxu0 0
          %2192 = vmatpush1.bf16.msra.mxu0 %v2172
          %2193 = vmatprep.subr.bf16.mxu0 0
          %2194 = vmatpush1.bf16.msra.mxu0 %v2173
          %2195 = vmatprep.subr.bf16.mxu0 0
          %2196 = vmatpush1.bf16.msra.mxu0 %v2174
          %2197 = vmatprep.subr.bf16.mxu0 0
          %2198 = vmatpush1.bf16.msra.mxu0 %v2175
          %2199 = vmatprep.subr.bf16.mxu0 0
          %2200 = vmatpush1.bf16.msra.mxu0 %v2176
          %2201 = vmatprep.subr.bf16.mxu0 0
          %2202 = vmatpush1.bf16.msra.mxu0 0
          %2203 = vmatprep.subr.bf16.mxu0 0
          %2204 = vmatpush1.bf16.msra.mxu0 0
          %2205 = vmatprep.subr.bf16.mxu0 0
          %2206 = vmatpush1.bf16.msra.mxu0 0
          %2207 = vmatprep.subr.bf16.mxu0 0
          %2208 = vmatpush1.bf16.msra.mxu0 0
          %2209 = vmatprep.subr.bf16.mxu0 0
          %2210 = vmatpush1.bf16.msra.mxu0 0
          %2211 = vmatprep.subr.bf16.mxu0 0
          %2212 = vmatpush1.bf16.msra.mxu0 0
          %2213 = vmatprep.subr.bf16.mxu0 0
          %2214 = vmatpush1.bf16.msra.mxu0 0
          %2215 = vmatprep.subr.bf16.mxu0 0
          %2216 = vmatpush1.bf16.msra.mxu0 0
          %2217 = vmatprep.mubr.bf16.mxu0 0
          %2218 = vmatmul.mubr.bf16.gmra.mrb[0].mxu0 %v2119
          %v2219 = vpop.f32.mrb[0].mxu0
          %v2220 = vadd.f32 %v2136, %v2219
          %v2221 = vpop.f32.mrb[0].mxu0
          %v2222 = vpop.f32.mrb[0].mxu0
          %v2223 = vpop.f32.mrb[0].mxu0
          %2224 = vdwg.mxu0
          %2225 = vst [vmem:[%s265] sm:$0x1] %v2220
        $region52: #{tpu_custom_call.1} parent=43 // pred_fallthru
          _
        %s2226 = sand.u32 %s173, 1
        %s2227 = scalar_lea.sflag [#allocation4], %s2226
        %s2228 = sand.u32 %s173, 1
        %s2229 = scalar_lea.vmem [#allocation3], %s2228
        // Predicated region
        $region53: #{tpu_custom_call.1} parent=43 // pred_check
          %p2230 = pneg %p183
        $region54: #{tpu_custom_call.1} parent=43 // pred_check_branch
          %2232 = sbr.rel (%p2230) target = $region56
        $region55: #{tpu_custom_call.1} parent=43 // pred_region
          %s2234 = ssub.s32 16, 16
          %2235 = vsyncadd %s2227, %s2234
          %s2236 = smul.addr %s24, 16
          %s2237 = scalar_lea.hbm %s6, %s2236
          %s2239 = sshll.u32 %s2229, 4
          %s2240 = int_to_ptr.vmem [resolvable:$true] %s2239
          %2242 = dma.vmem_to_hbm [thread:$0]  %s2240, 16, %s2237, %s2227
        $region56: #{tpu_custom_call.1} parent=43 // pred_fallthru
          _
      $region44: #{tpu_custom_call.1} parent=5 // pred_fallthru
        _
      %p2243 = scmp.le.s32.totalorder 2, %s15
      // Predicated region
      $region57: #{tpu_custom_call.1} parent=5 // pred_check
        %p2244 = pneg %p2243
      $region58: #{tpu_custom_call.1} parent=5 // pred_check_branch
        %2246 = sbr.rel (%p2244) target = $region60
      $region59: #{tpu_custom_call.1} parent=5 // pred_region
        %s2247 = ssub.s32 %s15, 2
        // Predicated region
        $region61: #{tpu_custom_call.1} parent=59 // pred_check
          %p2248 = pneg %p189
        $region62: #{tpu_custom_call.1} parent=59 // pred_check_branch
          %2250 = sbr.rel (%p2248) target = $region64
        $region63: #{tpu_custom_call.1} parent=59 // pred_region
          %s2251 = sand.u32 %s174, 1
          %s2252 = scalar_lea.sflag [#allocation4], %s2251
          %s2253 = sand.u32 %s174, 1
          %s2254 = scalar_lea.vmem [#allocation3], %s2253
          %2255 = dma.done %s2252, 16
        $region64: #{tpu_custom_call.1} parent=59 // pred_fallthru
          _
      $region60: #{tpu_custom_call.1} parent=5 // pred_fallthru
        _
    $region6: #{tpu_custom_call.1} parent=1 // loop_footer
      %s19 = sadd.s32 1, %s15
    $region7: #{tpu_custom_call.1} parent=1 // loop_footer_branch
      %14 = sbr.rel target = $region3
    $region8: #{tpu_custom_call.1} parent=1 // loop_exit
      _
    %2256 = vsyncpa [#allocation4], 1
    %s2257 = scalar_lea.sflag [#allocation4], 1
    %2258 = vsyncpa %s2257, 1

</llo_original>
